<compile_context>
chip_gen: v7x
topology: tpu7x:2x2x1
jax: 0.10.0
libtpu: 0.0.40
codegen_flags: <defaults>
</compile_context>

<pallas_src>
import jax
import jax.numpy as jnp
import numpy as np
from jax.experimental import pallas as pl
from jax.experimental.pallas import tpu as pltpu

NEG_SLOPE = 0.2
NEG_INF = -1e30


# ---------------------------------------------------------------------------
# Pallas kernel: one (destination-tile, head) step
# ---------------------------------------------------------------------------
def _gat_attn_kernel(etype_ref, eetab_ref, ft_ref, el_ref, er_ref, rst_ref, attn_ref):
    """score -> leaky_relu -> masked edge-softmax -> aggregate, for TV destinations."""
    et = etype_ref[...]                  # (TV, N) int32, -1 encodes "no edge"
    el = el_ref[...]                     # (1, N)   f32, el[u] = <ft[u], attn_l>
    er = er_ref[...]                     # (TV, 1)  f32, er[v] = <ft[v], attn_r>
    tab = eetab_ref[...]                 # (1, T)   f32, per-(etype, head) bias table

    # per-edge bias built in-kernel from the tiny table (T is a small static constant)
    num_etypes = tab.shape[-1]
    ee = jnp.zeros(et.shape, jnp.float32)
    for t in range(num_etypes):
        ee = jnp.where(et == t, tab[:, t:t + 1], ee)

    # s[v, u] = el[u] + er[v] + ee[v, u]; LeakyReLU; masked softmax over sources u
    s = er + el + ee                                   # (TV, N)
    s = jnp.maximum(s, NEG_SLOPE * s)                  # LeakyReLU (slope < 1)
    mask = et >= 0
    s = jnp.where(mask, s, NEG_INF)

    m = jnp.max(s, axis=-1, keepdims=True)             # (TV, 1)
    p = jnp.where(mask, jnp.exp(s - m), 0.0)           # (TV, N)
    denom = jnp.sum(p, axis=-1, keepdims=True)         # (TV, 1)
    # zero-in-degree guard: clamp denom so masked rows give 0, not NaN.
    # approx=True is fine in production; exact reciprocal keeps the test tolerance tight.
    inv = pl.reciprocal(jnp.maximum(denom, 1e-30), approx=False)
    a = p * inv                                        # (TV, N) attention coefficients

    attn_ref[...] = a
    # message passing on the MXU: rst[v] = sum_u a[v, u] * ft[u]   (bf16 in, f32 acc)
    rst_ref[...] = jnp.dot(a.astype(ft_ref.dtype), ft_ref[...],
                           preferred_element_type=jnp.float32)


def _choose_tile_v(N, budget_bytes=24 * 1024 * 1024):
    """Destination-tile size: two (TV, N) 4-byte streams, double buffered."""
    tv = min(128, N)
    while tv > 8 and (N % tv != 0 or 16 * tv * N > budget_bytes):
        tv //= 2
    return tv
    # TODO(synk): N not divisible by 8 would need padding of the node axis.


def gat_attention(etype_enc, eetab_h, ft_h, el_h, er_h, *, tile_v=None):
    """etype_enc: (N,N) i32 (-1 = no edge); eetab_h: (H,1,T); ft_h: (H,N,D) bf16;
    el_h: (H,1,N); er_h: (H,N,1).  Returns rst (H,N,D) f32 and attn (H,N,N) f32."""
    H, N, D = ft_h.shape
    T = eetab_h.shape[-1]
    TV = tile_v or _choose_tile_v(N)
    assert N % TV == 0 and TV % 8 == 0

    grid = (N // TV, H)  # destination tiles outer, heads inner (etype tile reused per h)
    return pl.pallas_call(
        _gat_attn_kernel,
        out_shape=(jax.ShapeDtypeStruct((H, N, D), jnp.float32),
                   jax.ShapeDtypeStruct((H, N, N), jnp.float32)),
        grid=grid,
        in_specs=[
            pl.BlockSpec((TV, N), lambda v, h: (v, 0)),           # edge types + mask (shared over h)
            pl.BlockSpec((None, 1, T), lambda v, h: (h, 0, 0)),   # per-head (etype -> bias) table
            pl.BlockSpec((None, N, D), lambda v, h: (h, 0, 0)),   # projected features (bf16)
            pl.BlockSpec((None, 1, N), lambda v, h: (h, 0, 0)),   # el (source term), lane-dense row
            pl.BlockSpec((None, TV, 1), lambda v, h: (h, v, 0)),  # er (dest term), column
        ],
        out_specs=(pl.BlockSpec((None, TV, D), lambda v, h: (h, v, 0)),   # rst
                   pl.BlockSpec((None, TV, N), lambda v, h: (h, v, 0))),  # attention (dense)
        compiler_params=pltpu.CompilerParams(
            dimension_semantics=("parallel", "parallel"),
            vmem_limit_bytes=48 * 1024 * 1024),
    )(etype_enc, eetab_h, ft_h, el_h, er_h)


# ---------------------------------------------------------------------------
# myGATConv forward (cheap XLA glue + Pallas hot path)
# ---------------------------------------------------------------------------
def my_gat_conv_forward(params, feat, etype_vu, adj_mask, num_heads, out_feats, edge_feats,
                        *, tile_v=None):
    N = feat.shape[0]
    H, D, EF = num_heads, out_feats, edge_feats

    # fc / fc_e projections: tiny GEMMs, left to XLA per perf review (a grid=(1,)
    # Pallas matmul only adds launch overhead and risks VMEM OOM at realistic sizes).
    ft = (feat @ params["W_fc"]).reshape(N, H, D)                       # (N, H, D) f32
    ef = (params["edge_emb"] @ params["W_fc_e"]).reshape(-1, H, EF)     # (T, H, EF)
    ee_table = jnp.sum(ef * params["attn_e"], axis=-1)                  # (T, H)

    # hoisted score halves (once per node/head, instead of inside the NxN hot loop)
    el = jnp.sum(ft * params["attn_l"], axis=-1)                        # (N, H)  source term
    er = jnp.sum(ft * params["attn_r"], axis=-1)                        # (N, H)  dest   term

    # head-major layouts for the kernel
    ft_h = jnp.transpose(ft, (1, 0, 2)).astype(jnp.bfloat16)            # (H, N, D) bf16 (MXU)
    el_h = jnp.transpose(el, (1, 0)).reshape(H, 1, N)                   # (H, 1, N)
    er_h = jnp.transpose(er, (1, 0)).reshape(H, N, 1)                   # (H, N, 1)
    eetab_h = jnp.transpose(ee_table, (1, 0)).reshape(H, 1, -1)         # (H, 1, T)

    # single int32 edge stream: etype, with -1 marking "no edge" (mask folded in)
    etype_enc = jnp.where(adj_mask > 0, etype_vu, -1).astype(jnp.int32)  # (N, N) [v, u]

    rst_h, attn_h = gat_attention(etype_enc, eetab_h, ft_h, el_h, er_h, tile_v=tile_v)

    rst = jnp.transpose(rst_h, (1, 0, 2))                               # (N, H, D) like PyTorch
    # attention returned densely as (H, N_dst, N_src) instead of DGL's (E, H, 1)
    return rst, attn_h


# ---------------------------------------------------------------------------
# Pure-JAX reference (faithful f32 math, for correctness check)
# ---------------------------------------------------------------------------
def reference_forward(params, feat, etype_vu, adj_mask, num_heads, out_feats, edge_feats):
    N = feat.shape[0]
    H, D, EF = num_heads, out_feats, edge_feats
    ft = (feat @ params["W_fc"]).reshape(N, H, D)
    ef = (params["edge_emb"] @ params["W_fc_e"]).reshape(-1, H, EF)
    ee_table = jnp.sum(ef * params["attn_e"], axis=-1)                  # (T, H)
    el = jnp.sum(ft * params["attn_l"], axis=-1)                        # (N, H)  per source
    er = jnp.sum(ft * params["attn_r"], axis=-1)                        # (N, H)  per dest
    ee = ee_table[etype_vu]                                             # (N, N, H) [v, u, h]
    s = el[None, :, :] + er[:, None, :] + ee                            # (v, u, h)
    s = jnp.where(s >= 0.0, s, NEG_SLOPE * s)
    s = jnp.where(adj_mask[:, :, None] > 0.0, s, NEG_INF)
    m = jnp.max(s, axis=1, keepdims=True)
    p = jnp.exp(s - m) * adj_mask[:, :, None]
    a = p / jnp.sum(p, axis=1, keepdims=True)                           # (v, u, h)
    rst = jnp.einsum("vuh,uhd->vhd", a, ft)
    return rst, jnp.transpose(a, (2, 0, 1))


# ---------------------------------------------------------------------------
if __name__ == "__main__":
    # small, module-consistent sizes (large enough to exercise the destination tiling)
    N = 256           # number of nodes  -> 2 destination tiles of TV=128
    F_IN = 32         # in_feats
    D = 16            # out_feats
    H = 8             # num_heads  (H*D = 128 per node)
    EF = 8            # edge_feats
    T = 3             # num_etypes

    key = jax.random.PRNGKey(0)
    ks = jax.random.split(key, 8)
    gain = float(np.sqrt(2.0))  # calculate_gain('relu')

    def xavier(k, shape, fan_in, fan_out):
        std = gain * np.sqrt(2.0 / (fan_in + fan_out))
        return jax.random.normal(k, shape, dtype=jnp.float32) * std

    params = {
        "W_fc": xavier(ks[0], (F_IN, H * D), F_IN, H * D),          # fc.weight.T
        "edge_emb": jax.random.normal(ks[1], (T, EF), dtype=jnp.float32),
        "W_fc_e": xavier(ks[2], (EF, H * EF), EF, H * EF),          # fc_e.weight.T
        "attn_l": xavier(ks[3], (1, H, D), H, D),
        "attn_r": xavier(ks[4], (1, H, D), H, D),
        "attn_e": xavier(ks[5], (1, H, EF), H, EF),
    }

    feat = jax.random.normal(ks[6], (N, F_IN), dtype=jnp.float32)

    # synthetic graph: self loops + a ring, so every node has in-degree >= 1
    eye = jnp.eye(N, dtype=jnp.float32)
    ring = jnp.roll(eye, shift=1, axis=1)                            # edge (v-1) -> v
    adj_mask = jnp.clip(eye + ring, 0.0, 1.0)                        # adj[v, u]
    etype_vu = jax.random.randint(ks[7], (N, N), 0, T, dtype=jnp.int32)

    rst, attn = my_gat_conv_forward(params, feat, etype_vu, adj_mask, H, D, EF)
    rst = jax.block_until_ready(rst)
    attn = jax.block_until_ready(attn)

    rst_ref, attn_ref = reference_forward(params, feat, etype_vu, adj_mask, H, D, EF)

    assert rst.shape == (N, H, D) and attn.shape == (H, N, N)
    # attention is computed fully in f32 inside the kernel -> tight tolerance
    np.testing.assert_allclose(np.asarray(attn), np.asarray(attn_ref), rtol=1e-4, atol=1e-5)
    # aggregation runs in bf16 on the MXU (f32 accumulation) -> loosened tolerance
    np.testing.assert_allclose(np.asarray(rst), np.asarray(rst_ref), rtol=2e-2, atol=2e-2)

    print("KERNEL_OK")
</pallas_src>

<mosaic_0001>
module attributes {stable_mosaic.version = 11 : i64} {
  func.func @_gat_attn_kernel(%arg0: i32, %arg1: i32, %arg2: memref<128x256xi32, #tpu.memory_space<vmem>>, %arg3: memref<1x1x3xf32, #tpu.memory_space<vmem>>, %arg4: memref<1x256x16xbf16, #tpu.memory_space<vmem>>, %arg5: memref<1x1x256xf32, #tpu.memory_space<vmem>>, %arg6: memref<1x128x1xf32, #tpu.memory_space<vmem>>, %arg7: memref<1x128x16xf32, #tpu.memory_space<vmem>>, %arg8: memref<1x128x256xf32, #tpu.memory_space<vmem>>) attributes {dimension_semantics = [#tpu.dimension_semantics<parallel>, #tpu.dimension_semantics<parallel>], iteration_bounds = array<i64: 2, 8>, scalar_prefetch = 0 : i64, scratch_operands = 0 : i64, tpu.core_type = #tpu.core_type<tc>, window_params = [{transform_indices = @transform_0, window_bounds = array<i64: 128, 256>}, {transform_indices = @transform_1, window_bounds = array<i64: 1, 1, 3>}, {transform_indices = @transform_2, window_bounds = array<i64: 1, 256, 16>}, {transform_indices = @transform_3, window_bounds = array<i64: 1, 1, 256>}, {transform_indices = @transform_4, window_bounds = array<i64: 1, 128, 1>}, {transform_indices = @transform_5, window_bounds = array<i64: 1, 128, 16>}, {transform_indices = @transform_6, window_bounds = array<i64: 1, 128, 256>}]} {
    %c0 = arith.constant 0 : index
    %c0_0 = arith.constant 0 : index
    %0 = vector.load %arg2[%c0, %c0_0] : memref<128x256xi32, #tpu.memory_space<vmem>>, vector<128x256xi32>
    %c0_1 = arith.constant 0 : index
    %c0_2 = arith.constant 0 : index
    %c0_3 = arith.constant 0 : index
    %1 = vector.load %arg5[%c0_1, %c0_2, %c0_3] : memref<1x1x256xf32, #tpu.memory_space<vmem>>, vector<1x1x256xf32>
    %2 = vector.shape_cast %1 : vector<1x1x256xf32> to vector<1x256xf32>
    %c0_4 = arith.constant 0 : index
    %c0_5 = arith.constant 0 : index
    %c0_6 = arith.constant 0 : index
    %3 = vector.load %arg6[%c0_4, %c0_5, %c0_6] : memref<1x128x1xf32, #tpu.memory_space<vmem>>, vector<1x128x1xf32>
    %4 = vector.shape_cast %3 : vector<1x128x1xf32> to vector<128x1xf32>
    %c0_7 = arith.constant 0 : index
    %c0_8 = arith.constant 0 : index
    %c0_9 = arith.constant 0 : index
    %5 = vector.load %arg3[%c0_7, %c0_8, %c0_9] : memref<1x1x3xf32, #tpu.memory_space<vmem>>, vector<1x1x3xf32>
    %6 = vector.shape_cast %5 : vector<1x1x3xf32> to vector<1x3xf32>
    %cst = arith.constant 0.000000e+00 : f32
    %7 = vector.broadcast %cst : f32 to vector<128x256xf32>
    %c0_i32 = arith.constant 0 : i32
    %8 = vector.broadcast %c0_i32 : i32 to vector<128x256xi32>
    %9 = arith.cmpi eq, %0, %8 : vector<128x256xi32>
    %10 = vector.extract_strided_slice %6 {offsets = [0, 0], sizes = [1, 1], strides = [1, 1]} : vector<1x3xf32> to vector<1x1xf32>
    %11 = vector.shape_cast %10 : vector<1x1xf32> to vector<1x1xf32>
    %12 = vector.broadcast %11 : vector<1x1xf32> to vector<128x256xf32>
    %13 = arith.select %9, %12, %7 : vector<128x256xi1>, vector<128x256xf32>
    %c1_i32 = arith.constant 1 : i32
    %14 = vector.broadcast %c1_i32 : i32 to vector<128x256xi32>
    %15 = arith.cmpi eq, %0, %14 : vector<128x256xi32>
    %16 = vector.extract_strided_slice %6 {offsets = [0, 1], sizes = [1, 1], strides = [1, 1]} : vector<1x3xf32> to vector<1x1xf32>
    %17 = vector.shape_cast %16 : vector<1x1xf32> to vector<1x1xf32>
    %18 = vector.broadcast %17 : vector<1x1xf32> to vector<128x256xf32>
    %19 = arith.select %15, %18, %13 : vector<128x256xi1>, vector<128x256xf32>
    %c2_i32 = arith.constant 2 : i32
    %20 = vector.broadcast %c2_i32 : i32 to vector<128x256xi32>
    %21 = arith.cmpi eq, %0, %20 : vector<128x256xi32>
    %22 = vector.extract_strided_slice %6 {offsets = [0, 2], sizes = [1, 1], strides = [1, 1]} : vector<1x3xf32> to vector<1x1xf32>
    %23 = vector.shape_cast %22 : vector<1x1xf32> to vector<1x1xf32>
    %24 = vector.broadcast %23 : vector<1x1xf32> to vector<128x256xf32>
    %25 = arith.select %21, %24, %19 : vector<128x256xi1>, vector<128x256xf32>
    %26 = vector.broadcast %4 : vector<128x1xf32> to vector<128x256xf32>
    %27 = vector.broadcast %2 : vector<1x256xf32> to vector<128x256xf32>
    %28 = arith.addf %26, %27 : vector<128x256xf32>
    %29 = arith.addf %28, %25 : vector<128x256xf32>
    %cst_10 = arith.constant 2.000000e-01 : f32
    %30 = vector.broadcast %cst_10 : f32 to vector<128x256xf32>
    %31 = arith.mulf %30, %29 : vector<128x256xf32>
    %32 = arith.maximumf %29, %31 : vector<128x256xf32>
    %c0_i32_11 = arith.constant 0 : i32
    %33 = vector.broadcast %c0_i32_11 : i32 to vector<128x256xi32>
    %34 = arith.cmpi sge, %0, %33 : vector<128x256xi32>
    %cst_12 = arith.constant -1.000000e+30 : f32
    %35 = vector.broadcast %cst_12 : f32 to vector<128x256xf32>
    %36 = arith.select %34, %32, %35 : vector<128x256xi1>, vector<128x256xf32>
    %cst_13 = arith.constant dense<0xFF800000> : vector<128xf32>
    %37 = vector.multi_reduction <maximumf>, %36, %cst_13 [1] : vector<128x256xf32> to vector<128xf32>
    %38 = vector.shape_cast %37 : vector<128xf32> to vector<128x1xf32>
    %39 = vector.broadcast %38 : vector<128x1xf32> to vector<128x256xf32>
    %40 = arith.subf %36, %39 : vector<128x256xf32>
    %41 = math.exp %40 : vector<128x256xf32>
    %cst_14 = arith.constant 0.000000e+00 : f32
    %42 = vector.broadcast %cst_14 : f32 to vector<128x256xf32>
    %43 = arith.select %34, %41, %42 : vector<128x256xi1>, vector<128x256xf32>
    %cst_15 = arith.constant dense<0.000000e+00> : vector<128xf32>
    %44 = vector.multi_reduction <add>, %43, %cst_15 [1] : vector<128x256xf32> to vector<128xf32>
    %45 = vector.shape_cast %44 : vector<128xf32> to vector<128x1xf32>
    %cst_16 = arith.constant 1.000000e-30 : f32
    %46 = vector.broadcast %cst_16 : f32 to vector<128x1xf32>
    %47 = arith.maximumf %45, %46 : vector<128x1xf32>
    %48 = tpu.reciprocal %47 : vector<128x1xf32> -> vector<128x1xf32>
    %49 = vector.broadcast %48 : vector<128x1xf32> to vector<128x256xf32>
    %50 = arith.mulf %43, %49 : vector<128x256xf32>
    %c0_17 = arith.constant 0 : index
    %c0_18 = arith.constant 0 : index
    %c0_19 = arith.constant 0 : index
    %51 = vector.load %arg8[%c0_17, %c0_18, %c0_19] : memref<1x128x256xf32, #tpu.memory_space<vmem>>, vector<1x128x256xf32>
    %52 = vector.shape_cast %51 : vector<1x128x256xf32> to vector<128x256xf32>
    %53 = vector.shape_cast %50 : vector<128x256xf32> to vector<1x128x256xf32>
    tpu.vector_store %arg8[%c0_17, %c0_18, %c0_19], %53 {strides = array<i32>} : memref<1x128x256xf32, #tpu.memory_space<vmem>>, vector<1x128x256xf32>,
    %54 = arith.truncf %50 : vector<128x256xf32> to vector<128x256xbf16>
    %c0_20 = arith.constant 0 : index
    %c0_21 = arith.constant 0 : index
    %c0_22 = arith.constant 0 : index
    %55 = vector.load %arg4[%c0_20, %c0_21, %c0_22] : memref<1x256x16xbf16, #tpu.memory_space<vmem>>, vector<1x256x16xbf16>
    %56 = vector.shape_cast %55 : vector<1x256x16xbf16> to vector<256x16xbf16>
    %cst_23 = arith.constant dense<0.000000e+00> : vector<128x16xf32>
    %57 = tpu.matmul %54, %56, %cst_23 {dimension_numbers = #tpu.dot_dimension_numbers<[1], [0], [0], [1], [0, 0, 1, 1], [], []>} : vector<128x256xbf16>, vector<256x16xbf16>, vector<128x16xf32> -> vector<128x16xf32>
    %c0_24 = arith.constant 0 : index
    %c0_25 = arith.constant 0 : index
    %c0_26 = arith.constant 0 : index
    %58 = vector.load %arg7[%c0_24, %c0_25, %c0_26] : memref<1x128x16xf32, #tpu.memory_space<vmem>>, vector<1x128x16xf32>
    %59 = vector.shape_cast %58 : vector<1x128x16xf32> to vector<128x16xf32>
    %60 = vector.shape_cast %57 : vector<128x16xf32> to vector<1x128x16xf32>
    tpu.vector_store %arg7[%c0_24, %c0_25, %c0_26], %60 {strides = array<i32>} : memref<1x128x16xf32, #tpu.memory_space<vmem>>, vector<1x128x16xf32>,
    return
  }
  func.func @transform_0(%arg0: i32, %arg1: i32) -> (i32, i32) {
    %c0_i32 = arith.constant 0 : i32
    %c0_i32_0 = arith.constant 0 : i32
    return %arg0, %c0_i32 : i32, i32
  }
  func.func @transform_1(%arg0: i32, %arg1: i32) -> (i32, i32, i32) {
    %c0_i32 = arith.constant 0 : i32
    %c0_i32_0 = arith.constant 0 : i32
    %c0_i32_1 = arith.constant 0 : i32
    return %arg1, %c0_i32, %c0_i32_0 : i32, i32, i32
  }
  func.func @transform_2(%arg0: i32, %arg1: i32) -> (i32, i32, i32) {
    %c0_i32 = arith.constant 0 : i32
    %c0_i32_0 = arith.constant 0 : i32
    %c0_i32_1 = arith.constant 0 : i32
    return %arg1, %c0_i32, %c0_i32_0 : i32, i32, i32
  }
  func.func @transform_3(%arg0: i32, %arg1: i32) -> (i32, i32, i32) {
    %c0_i32 = arith.constant 0 : i32
    %c0_i32_0 = arith.constant 0 : i32
    %c0_i32_1 = arith.constant 0 : i32
    return %arg1, %c0_i32, %c0_i32_0 : i32, i32, i32
  }
  func.func @transform_4(%arg0: i32, %arg1: i32) -> (i32, i32, i32) {
    %c0_i32 = arith.constant 0 : i32
    %c0_i32_0 = arith.constant 0 : i32
    return %arg1, %arg0, %c0_i32 : i32, i32, i32
  }
  func.func @transform_5(%arg0: i32, %arg1: i32) -> (i32, i32, i32) {
    %c0_i32 = arith.constant 0 : i32
    %c0_i32_0 = arith.constant 0 : i32
    return %arg1, %arg0, %c0_i32 : i32, i32, i32
  }
  func.func @transform_6(%arg0: i32, %arg1: i32) -> (i32, i32, i32) {
    %c0_i32 = arith.constant 0 : i32
    %c0_i32_0 = arith.constant 0 : i32
    return %arg1, %arg0, %c0_i32 : i32, i32, i32
  }
}

</mosaic_0001>

<llo_original>
// kernel: tpu_custom_call.1
$region0: #{tpu_custom_call.1}
  #allocation0 [shape = 'u32[]', space=smem, size = 0x4, offset = 0x4, fixed_abs, tag = 'smem constant byte address 0x4 - core index']
  #allocation1 [shape = 'u32[144,128]{1,0:T(1,128)}', space=vmem, size = 0x12000, scoped, tag = 'internal scratch']
  %s0 = inlined_call_operand.hbm [shape: s32[256,256], index: 0, kind: input, shape index: {}]
  %s1 = inlined_call_operand.vmem [shape: f32[8,1,3], index: 1, kind: input, shape index: {}]
  %s2 = inlined_call_operand.vmem [shape: bf16[8,256,16], index: 2, kind: input, shape index: {}]
  %s3 = inlined_call_operand.hbm [shape: f32[8,1,256], index: 3, kind: input, shape index: {}]
  %s4 = inlined_call_operand.vmem [shape: f32[8,256,1], index: 4, kind: input, shape index: {}]
  %s5 = inlined_call_operand.vmem [shape: f32[8,256,16], index: 5, kind: output, shape index: {0}]
  %s6 = inlined_call_operand.hbm [shape: f32[8,256,256], index: 6, kind: output, shape index: {1}]
  %7 = xla_tuple %s5, %s6
  %s8 = sld [smem:[#allocation0]]
  $region69: #{tpu_custom_call.1} parent=0
    _
  %s10 = ssub.s32 1, %s8
  %s11 = scalar_select 0, %s10, %s8
  $region1: #{tpu_custom_call.1} parent=0
    #allocation2 [shape = 'u8[262144]{0}', space=vmem, size = 0x40000, scoped, tag = 'input window, operand 0']
    #allocation3 [shape = 's32[2]{0}', space=sflag, size = 0x8, scoped, tag = 'scoped memory for tpu_custom_call.1']
    #allocation4 [shape = 's32[2]{0}', space=sflag, size = 0x8, scoped, tag = 'scoped memory for tpu_custom_call.1']
    #allocation5 [shape = 'u8[2048]{0}', space=vmem, size = 0x800, scoped, tag = 'input window, operand 3']
    #allocation6 [shape = 's32[2]{0}', space=sflag, size = 0x8, scoped, tag = 'scoped memory for tpu_custom_call.1']
    #allocation7 [shape = 'u8[262144]{0}', space=vmem, size = 0x40000, scoped, tag = 'output window, operand 1']
    %12 = vsyncpa [#allocation3], 0
    %s13 = scalar_lea.sflag [#allocation3], 1
    %14 = vsyncpa %s13, 0
    %15 = vsyncpa [#allocation6], 0
    %s16 = scalar_lea.sflag [#allocation6], 1
    %17 = vsyncpa %s16, 0
    %18 = vsyncpa [#allocation4], 0
    %s19 = scalar_lea.sflag [#allocation4], 1
    %20 = vsyncpa %s19, 0
    loop: start=0, step=1, limit=18
    $region2: #{tpu_custom_call.1} parent=1 // loop_pre_header
      _
    $region3: #{tpu_custom_call.1} parent=1 // loop_header
      %s22 = sphi 0, %s26
      %p23 = scmp.ge.s32.totalorder %s22, 18
      %s29 = sphi 0, %s41
      %s30 = sphi 0, %s37
      %s31 = sphi 0, %s29
      %s32 = sphi 0, %s30
      %s33 = sphi 0, %s31
      %s34 = sphi 0, %s32
      %s44 = sphi 0, %s46
      %s47 = sphi 0, %s44
      %s48 = sphi 0, %s47
      %s64 = sphi 0, %s48
      %s70 = sphi 0, %s72
      %s73 = sphi 0, %s70
      %s74 = sphi 0, %s73
      %s90 = sphi 0, %s74
      %s96 = sphi 0, %s98
      %s99 = sphi 0, %s96
      %s100 = sphi 0, %s99
      %s116 = sphi 0, %s100
      %s122 = sphi 0, %s124
      %s125 = sphi 0, %s122
      %s126 = sphi 0, %s125
      %s142 = sphi 0, %s126
      %s150 = sphi 0, %s152
      %s153 = sphi 0, %s150
      %s154 = sphi 0, %s153
      %s170 = sphi 0, %s154
      %s178 = sphi 0, %s180
      %s181 = sphi 0, %s178
      %s182 = sphi 0, %s181
      %s198 = sphi 0, %s182
      %s206 = sphi 0, %s208
      %s209 = sphi 0, %s206
      %s210 = sphi 0, %s209
      %s226 = sphi 0, %s210
    $region4: #{tpu_custom_call.1} parent=1 // loop_header_branch
      %25 = sbr.rel (%p23) target = $region8
    $region5: #{tpu_custom_call.1} parent=1 // loop_body
      %s27 = ssub.s32 %s22, 1
      %s28 = ssub.s32 %s22, 2
      %s35 = sadd.s32 1, %s30
      %p36 = scmp.ge.s32.totalorder %s35, 8
      %s37 = scalar_select %p36, 0, %s35
      %s38 = sadd.s32 1, %s29
      %s39 = scalar_select %p36, %s38, %s29
      %p40 = scmp.ge.s32.totalorder %s39, 2
      %s41 = scalar_select %p40, 0, %s39
      %s42 = ssub.s32 %s29, %s41
      %p43 = scmp.eq.s32.totalorder %s42, 0
      %s45 = sadd.s32 %s44, 1
      %s46 = scalar_select %p43, %s44, %s45
      %p49 = pneg %p43
      %p50 = scmp.eq.s32.totalorder %s22, 15
      %p51 = por %p49, %p50
      %p52 = scmp.ne.s32.totalorder %s44, %s47
      %p53 = scmp.eq.s32.totalorder %s22, 0
      %p54 = por %p52, %p53
      %p55 = scmp.ne.s32.totalorder %s44, %s47
      %p56 = scmp.eq.s32.totalorder %s27, 15
      %p57 = por %p55, %p56
      %p58 = scmp.ne.s32.totalorder %s47, %s48
      %p59 = scmp.eq.s32.totalorder %s27, 0
      %p60 = por %p58, %p59
      %p61 = scmp.ne.s32.totalorder %s47, %s48
      %p62 = scmp.eq.s32.totalorder %s28, 15
      %p63 = por %p61, %p62
      %p65 = scmp.ne.s32.totalorder %s48, %s64
      %p66 = scmp.eq.s32.totalorder %s28, 0
      %p67 = por %p65, %p66
      %s68 = ssub.s32 %s30, %s37
      %p69 = scmp.eq.s32.totalorder %s68, 0
      %s71 = sadd.s32 %s70, 1
      %s72 = scalar_select %p69, %s70, %s71
      %p75 = pneg %p69
      %p76 = scmp.eq.s32.totalorder %s22, 15
      %p77 = por %p75, %p76
      %p78 = scmp.ne.s32.totalorder %s70, %s73
      %p79 = scmp.eq.s32.totalorder %s22, 0
      %p80 = por %p78, %p79
      %p81 = scmp.ne.s32.totalorder %s70, %s73
      %p82 = scmp.eq.s32.totalorder %s27, 15
      %p83 = por %p81, %p82
      %p84 = scmp.ne.s32.totalorder %s73, %s74
      %p85 = scmp.eq.s32.totalorder %s27, 0
      %p86 = por %p84, %p85
      %p87 = scmp.ne.s32.totalorder %s73, %s74
      %p88 = scmp.eq.s32.totalorder %s28, 15
      %p89 = por %p87, %p88
      %p91 = scmp.ne.s32.totalorder %s74, %s90
      %p92 = scmp.eq.s32.totalorder %s28, 0
      %p93 = por %p91, %p92
      %s94 = ssub.s32 %s30, %s37
      %p95 = scmp.eq.s32.totalorder %s94, 0
      %s97 = sadd.s32 %s96, 1
      %s98 = scalar_select %p95, %s96, %s97
      %p101 = pneg %p95
      %p102 = scmp.eq.s32.totalorder %s22, 15
      %p103 = por %p101, %p102
      %p104 = scmp.ne.s32.totalorder %s96, %s99
      %p105 = scmp.eq.s32.totalorder %s22, 0
      %p106 = por %p104, %p105
      %p107 = scmp.ne.s32.totalorder %s96, %s99
      %p108 = scmp.eq.s32.totalorder %s27, 15
      %p109 = por %p107, %p108
      %p110 = scmp.ne.s32.totalorder %s99, %s100
      %p111 = scmp.eq.s32.totalorder %s27, 0
      %p112 = por %p110, %p111
      %p113 = scmp.ne.s32.totalorder %s99, %s100
      %p114 = scmp.eq.s32.totalorder %s28, 15
      %p115 = por %p113, %p114
      %p117 = scmp.ne.s32.totalorder %s100, %s116
      %p118 = scmp.eq.s32.totalorder %s28, 0
      %p119 = por %p117, %p118
      %s120 = ssub.s32 %s30, %s37
      %p121 = scmp.eq.s32.totalorder %s120, 0
      %s123 = sadd.s32 %s122, 1
      %s124 = scalar_select %p121, %s122, %s123
      %p127 = pneg %p121
      %p128 = scmp.eq.s32.totalorder %s22, 15
      %p129 = por %p127, %p128
      %p130 = scmp.ne.s32.totalorder %s122, %s125
      %p131 = scmp.eq.s32.totalorder %s22, 0
      %p132 = por %p130, %p131
      %p133 = scmp.ne.s32.totalorder %s122, %s125
      %p134 = scmp.eq.s32.totalorder %s27, 15
      %p135 = por %p133, %p134
      %p136 = scmp.ne.s32.totalorder %s125, %s126
      %p137 = scmp.eq.s32.totalorder %s27, 0
      %p138 = por %p136, %p137
      %p139 = scmp.ne.s32.totalorder %s125, %s126
      %p140 = scmp.eq.s32.totalorder %s28, 15
      %p141 = por %p139, %p140
      %p143 = scmp.ne.s32.totalorder %s126, %s142
      %p144 = scmp.eq.s32.totalorder %s28, 0
      %p145 = por %p143, %p144
      %s146 = ssub.s32 %s30, %s37
      %s147 = ssub.s32 %s29, %s41
      %s148 = sor.u32 %s146, %s147
      %p149 = scmp.eq.s32.totalorder %s148, 0
      %s151 = sadd.s32 %s150, 1
      %s152 = scalar_select %p149, %s150, %s151
      %p155 = pneg %p149
      %p156 = scmp.eq.s32.totalorder %s22, 15
      %p157 = por %p155, %p156
      %p158 = scmp.ne.s32.totalorder %s150, %s153
      %p159 = scmp.eq.s32.totalorder %s22, 0
      %p160 = por %p158, %p159
      %p161 = scmp.ne.s32.totalorder %s150, %s153
      %p162 = scmp.eq.s32.totalorder %s27, 15
      %p163 = por %p161, %p162
      %p164 = scmp.ne.s32.totalorder %s153, %s154
      %p165 = scmp.eq.s32.totalorder %s27, 0
      %p166 = por %p164, %p165
      %p167 = scmp.ne.s32.totalorder %s153, %s154
      %p168 = scmp.eq.s32.totalorder %s28, 15
      %p169 = por %p167, %p168
      %p171 = scmp.ne.s32.totalorder %s154, %s170
      %p172 = scmp.eq.s32.totalorder %s28, 0
      %p173 = por %p171, %p172
      %s174 = ssub.s32 %s30, %s37
      %s175 = ssub.s32 %s29, %s41
      %s176 = sor.u32 %s174, %s175
      %p177 = scmp.eq.s32.totalorder %s176, 0
      %s179 = sadd.s32 %s178, 1
      %s180 = scalar_select %p177, %s178, %s179
      %p183 = pneg %p177
      %p184 = scmp.eq.s32.totalorder %s22, 15
      %p185 = por %p183, %p184
      %p186 = scmp.ne.s32.totalorder %s178, %s181
      %p187 = scmp.eq.s32.totalorder %s22, 0
      %p188 = por %p186, %p187
      %p189 = scmp.ne.s32.totalorder %s178, %s181
      %p190 = scmp.eq.s32.totalorder %s27, 15
      %p191 = por %p189, %p190
      %p192 = scmp.ne.s32.totalorder %s181, %s182
      %p193 = scmp.eq.s32.totalorder %s27, 0
      %p194 = por %p192, %p193
      %p195 = scmp.ne.s32.totalorder %s181, %s182
      %p196 = scmp.eq.s32.totalorder %s28, 15
      %p197 = por %p195, %p196
      %p199 = scmp.ne.s32.totalorder %s182, %s198
      %p200 = scmp.eq.s32.totalorder %s28, 0
      %p201 = por %p199, %p200
      %s202 = ssub.s32 %s30, %s37
      %s203 = ssub.s32 %s29, %s41
      %s204 = sor.u32 %s202, %s203
      %p205 = scmp.eq.s32.totalorder %s204, 0
      %s207 = sadd.s32 %s206, 1
      %s208 = scalar_select %p205, %s206, %s207
      %p211 = pneg %p205
      %p212 = scmp.eq.s32.totalorder %s22, 15
      %p213 = por %p211, %p212
      %p214 = scmp.ne.s32.totalorder %s206, %s209
      %p215 = scmp.eq.s32.totalorder %s22, 0
      %p216 = por %p214, %p215
      %p217 = scmp.ne.s32.totalorder %s206, %s209
      %p218 = scmp.eq.s32.totalorder %s27, 15
      %p219 = por %p217, %p218
      %p220 = scmp.ne.s32.totalorder %s209, %s210
      %p221 = scmp.eq.s32.totalorder %s27, 0
      %p222 = por %p220, %p221
      %p223 = scmp.ne.s32.totalorder %s209, %s210
      %p224 = scmp.eq.s32.totalorder %s28, 15
      %p225 = por %p223, %p224
      %p227 = scmp.ne.s32.totalorder %s210, %s226
      %p228 = scmp.eq.s32.totalorder %s28, 0
      %p229 = por %p227, %p228
      %p230 = scmp.le.s32.totalorder 1, %s22
      %p231 = scmp.lt.s32.totalorder %s22, 17
      %p232 = pnand %p230, %p231
      %p233 = pneg %p232
      // Predicated region
      $region9: #{tpu_custom_call.1} parent=5 // pred_check
        _
      $region10: #{tpu_custom_call.1} parent=5 // pred_check_branch
        %235 = sbr.rel (%p232) target = $region12
      $region11: #{tpu_custom_call.1} parent=5 // pred_region
        %s236 = ssub.s32 %s22, 1
      $region12: #{tpu_custom_call.1} parent=5 // pred_fallthru
        _
      %p237 = scmp.lt.s32.totalorder %s22, 16
      // Predicated region
      $region13: #{tpu_custom_call.1} parent=5 // pred_check
        %p238 = pneg %p237
      $region14: #{tpu_custom_call.1} parent=5 // pred_check_branch
        %240 = sbr.rel (%p238) target = $region16
      $region15: #{tpu_custom_call.1} parent=5 // pred_region
        // Predicated region
        $region17: #{tpu_custom_call.1} parent=15 // pred_check
          %p241 = pneg %p54
        $region18: #{tpu_custom_call.1} parent=15 // pred_check_branch
          %243 = sbr.rel (%p241) target = $region20
        $region19: #{tpu_custom_call.1} parent=15 // pred_region
          %s244 = sand.u32 %s44, 1
          %s245 = scalar_lea.sflag [#allocation3], %s244
          %s246 = sand.u32 %s44, 1
          %s247 = smul.addr %s246, 256
          %s248 = scalar_lea.vmem [#allocation2], %s247
          %s249 = smul.u32 16, %s29
          %s251 = ssub.s32 4096, 4096
          %252 = vsyncadd %s245, %s251
          %s253 = smul.addr %s249, 2
          %s254 = smul.addr %s253, 128
          %s255 = scalar_lea.hbm %s0, %s254
          %s256 = sshll.u32 %s248, 4
          %s257 = int_to_ptr.vmem [resolvable:$true] %s256
          %262 = dma.hbm_to_vmem [thread:$0]  %s255, 4096, %s257, %s245, 256, 256, 16
        $region20: #{tpu_custom_call.1} parent=15 // pred_fallthru
          _
        // Predicated region
        $region21: #{tpu_custom_call.1} parent=15 // pred_check
          %p263 = pneg %p80
        $region22: #{tpu_custom_call.1} parent=15 // pred_check_branch
          %265 = sbr.rel (%p263) target = $region24
        $region23: #{tpu_custom_call.1} parent=15 // pred_region
          %p266 = scmp.lt.s32.totalorder %s30, 7
          %s267 = scalar_select %p266, %s30, 7
          %s268 = scalar_lea.vmem %s1, %s267
        $region24: #{tpu_custom_call.1} parent=15 // pred_fallthru
          _
        // Predicated region
        $region25: #{tpu_custom_call.1} parent=15 // pred_check
          %p269 = pneg %p106
        $region26: #{tpu_custom_call.1} parent=15 // pred_check_branch
          %271 = sbr.rel (%p269) target = $region28
        $region27: #{tpu_custom_call.1} parent=15 // pred_region
          %p272 = scmp.lt.s32.totalorder %s30, 7
          %s273 = scalar_select %p272, %s30, 7
          %s274 = smul.addr %s273, 32
          %s275 = smul.addr %s274, 4
          %s276 = scalar_lea.vmem %s2, %s275
        $region28: #{tpu_custom_call.1} parent=15 // pred_fallthru
          _
        // Predicated region
        $region29: #{tpu_custom_call.1} parent=15 // pred_check
          %p277 = pneg %p132
        $region30: #{tpu_custom_call.1} parent=15 // pred_check_branch
          %279 = sbr.rel (%p277) target = $region32
        $region31: #{tpu_custom_call.1} parent=15 // pred_region
          %s280 = sand.u32 %s122, 1
          %s281 = scalar_lea.sflag [#allocation6], %s280
          %s282 = sand.u32 %s122, 1
          %s283 = smul.addr %s282, 2
          %s284 = scalar_lea.vmem [#allocation5], %s283
          %s286 = ssub.s32 32, 32
          %287 = vsyncadd %s281, %s286
          %s288 = smul.addr %s30, 2
          %s289 = smul.addr %s288, 16
          %s290 = scalar_lea.hbm %s3, %s289
          %s292 = sshll.u32 %s284, 4
          %s293 = int_to_ptr.vmem [resolvable:$true] %s292
          %295 = dma.hbm_to_vmem [thread:$0]  %s290, 32, %s293, %s281
        $region32: #{tpu_custom_call.1} parent=15 // pred_fallthru
          _
        // Predicated region
        $region33: #{tpu_custom_call.1} parent=15 // pred_check
          %p296 = pneg %p160
        $region34: #{tpu_custom_call.1} parent=15 // pred_check_branch
          %298 = sbr.rel (%p296) target = $region36
        $region35: #{tpu_custom_call.1} parent=15 // pred_region
          %s299 = smul.u32 16, %s29
          %p300 = scmp.lt.s32.totalorder %s30, 7
          %s301 = scalar_select %p300, %s30, 7
          %p302 = scmp.lt.s32.totalorder %s299, 31
          %s303 = scalar_select %p302, %s299, 31
          %s304 = smul.addr %s301, 32
          %s305 = sadd.s32 %s303, %s304
          %s306 = smul.addr %s305, 8
          %s307 = scalar_lea.vmem %s4, %s306
          %s308 = smul.u32 16, %s29
        $region36: #{tpu_custom_call.1} parent=15 // pred_fallthru
          _
      $region16: #{tpu_custom_call.1} parent=5 // pred_fallthru
        _
      %p309 = scmp.le.s32.totalorder 1, %s22
      %p310 = scmp.lt.s32.totalorder %s22, 17
      %p311 = pnand %p309, %p310
      %p312 = pneg %p311
      // Predicated region
      $region37: #{tpu_custom_call.1} parent=5 // pred_check
        _
      $region38: #{tpu_custom_call.1} parent=5 // pred_check_branch
        %314 = sbr.rel (%p311) target = $region40
      $region39: #{tpu_custom_call.1} parent=5 // pred_region
        %s315 = ssub.s32 %s22, 1
        %s316 = sand.u32 %s47, 1
        %s317 = scalar_lea.sflag [#allocation3], %s316
        %s318 = sand.u32 %s47, 1
        %s319 = smul.addr %s318, 256
        %s320 = scalar_lea.vmem [#allocation2], %s319
        // Predicated region
        $region41: #{tpu_custom_call.1} parent=39 // pred_check
          %p321 = pneg %p60
        $region42: #{tpu_custom_call.1} parent=39 // pred_check_branch
          %323 = sbr.rel (%p321) target = $region44
        $region43: #{tpu_custom_call.1} parent=39 // pred_region
          %324 = dma.done %s317, 4096
        $region44: #{tpu_custom_call.1} parent=39 // pred_fallthru
          _
        %s325 = sand.u32 %s125, 1
        %s326 = scalar_lea.sflag [#allocation6], %s325
        %s327 = sand.u32 %s125, 1
        %s328 = smul.addr %s327, 2
        %s329 = scalar_lea.vmem [#allocation5], %s328
        // Predicated region
        $region45: #{tpu_custom_call.1} parent=39 // pred_check
          %p330 = pneg %p138
        $region46: #{tpu_custom_call.1} parent=39 // pred_check_branch
          %332 = sbr.rel (%p330) target = $region48
        $region47: #{tpu_custom_call.1} parent=39 // pred_region
          %333 = dma.done %s326, 32
        $region48: #{tpu_custom_call.1} parent=39 // pred_fallthru
          _
        %s334 = sand.u32 %s47, 1
        %s335 = scalar_lea.sflag [#allocation3], %s334
        %s336 = sand.u32 %s47, 1
        %s337 = smul.addr %s336, 256
        %s338 = scalar_lea.vmem [#allocation2], %s337
        %p339 = pneg %p60
        %p340 = pneg %p57
        %p341 = scmp.lt.s32.totalorder %s32, 7
        %s342 = scalar_select %p341, %s32, 7
        %s343 = scalar_lea.vmem %s1, %s342
        %p344 = pneg %p86
        %p345 = pneg %p83
        %p346 = scmp.lt.s32.totalorder %s32, 7
        %s347 = scalar_select %p346, %s32, 7
        %s348 = smul.addr %s347, 32
        %s349 = smul.addr %s348, 4
        %s350 = scalar_lea.vmem %s2, %s349
        %p351 = pneg %p112
        %p352 = pneg %p109
        %s353 = sand.u32 %s125, 1
        %s354 = scalar_lea.sflag [#allocation6], %s353
        %s355 = sand.u32 %s125, 1
        %s356 = smul.addr %s355, 2
        %s357 = scalar_lea.vmem [#allocation5], %s356
        %p358 = pneg %p138
        %p359 = pneg %p135
        %s360 = smul.u32 16, %s31
        %p361 = scmp.lt.s32.totalorder %s32, 7
        %s362 = scalar_select %p361, %s32, 7
        %p363 = scmp.lt.s32.totalorder %s360, 31
        %s364 = scalar_select %p363, %s360, 31
        %s365 = smul.addr %s362, 32
        %s366 = sadd.s32 %s364, %s365
        %s367 = smul.addr %s366, 8
        %s368 = scalar_lea.vmem %s4, %s367
        %p369 = pneg %p166
        %p370 = pneg %p163
        %p371 = pneg %p194
        %p372 = pneg %p191
        %s373 = smul.u32 16, %s31
        %p374 = scmp.lt.s32.totalorder %s32, 7
        %s375 = scalar_select %p374, %s32, 7
        %p376 = scmp.lt.s32.totalorder %s373, 31
        %s377 = scalar_select %p376, %s373, 31
        %s378 = smul.addr %s375, 32
        %s379 = sadd.s32 %s377, %s378
        %s380 = smul.addr %s379, 8
        %s381 = scalar_lea.vmem %s5, %s380
        %p382 = pneg %p222
        %p383 = pneg %p219
        %s384 = sand.u32 %s209, 1
        %s385 = scalar_lea.sflag [#allocation4], %s384
        %s386 = sand.u32 %s209, 1
        %s387 = smul.addr %s386, 256
        %s388 = scalar_lea.vmem [#allocation7], %s387
        %s389 = smul.u32 16, %s31
        %p390 = scmp.lt.s32.totalorder %s32, 7
        %s391 = scalar_select %p390, %s32, 7
        %s392 = scalar_lea.vmem %s1, %s391
        %p393 = scmp.lt.s32.totalorder %s32, 7
        %s394 = scalar_select %p393, %s32, 7
        %s395 = smul.addr %s394, 32
        %s396 = smul.addr %s395, 4
        %s397 = scalar_lea.vmem %s2, %s396
        %s398 = smul.u32 16, %s31
        %p399 = scmp.lt.s32.totalorder %s32, 7
        %s400 = scalar_select %p399, %s32, 7
        %p401 = scmp.lt.s32.totalorder %s398, 31
        %s402 = scalar_select %p401, %s398, 31
        %s403 = smul.addr %s400, 32
        %s404 = sadd.s32 %s402, %s403
        %s405 = smul.addr %s404, 8
        %s406 = scalar_lea.vmem %s4, %s405
        %s407 = smul.u32 16, %s31
        %s408 = smul.u32 16, %s31
        %p409 = scmp.lt.s32.totalorder %s32, 7
        %s410 = scalar_select %p409, %s32, 7
        %p411 = scmp.lt.s32.totalorder %s408, 31
        %s412 = scalar_select %p411, %s408, 31
        %s413 = smul.addr %s410, 32
        %s414 = sadd.s32 %s412, %s413
        %s415 = smul.addr %s414, 8
        %s416 = scalar_lea.vmem %s5, %s415
        %s417 = smul.u32 16, %s31
        %s418 = smul.u32 16, %s31
        %v420 = vld [vmem:[%s320] sm:$0xff]
        %v421 = vld [vmem:[%s320 + $0x8] sm:$0xff]
        %v422 = vld [vmem:[%s320 + $0x10] sm:$0xff]
        %v423 = vld [vmem:[%s320 + $0x18] sm:$0xff]
        %v424 = vld [vmem:[%s320 + $0x20] sm:$0xff]
        %v425 = vld [vmem:[%s320 + $0x28] sm:$0xff]
        %v426 = vld [vmem:[%s320 + $0x30] sm:$0xff]
        %v427 = vld [vmem:[%s320 + $0x38] sm:$0xff]
        %v428 = vld [vmem:[%s320 + $0x40] sm:$0xff]
        %v429 = vld [vmem:[%s320 + $0x48] sm:$0xff]
        %v430 = vld [vmem:[%s320 + $0x50] sm:$0xff]
        %v431 = vld [vmem:[%s320 + $0x58] sm:$0xff]
        %v432 = vld [vmem:[%s320 + $0x60] sm:$0xff]
        %v433 = vld [vmem:[%s320 + $0x68] sm:$0xff]
        %v434 = vld [vmem:[%s320 + $0x70] sm:$0xff]
        %v435 = vld [vmem:[%s320 + $0x78] sm:$0xff]
        %v436 = vld [vmem:[%s320 + $0x80] sm:$0xff]
        %v437 = vld [vmem:[%s320 + $0x88] sm:$0xff]
        %v438 = vld [vmem:[%s320 + $0x90] sm:$0xff]
        %v439 = vld [vmem:[%s320 + $0x98] sm:$0xff]
        %v440 = vld [vmem:[%s320 + $0xa0] sm:$0xff]
        %v441 = vld [vmem:[%s320 + $0xa8] sm:$0xff]
        %v442 = vld [vmem:[%s320 + $0xb0] sm:$0xff]
        %v443 = vld [vmem:[%s320 + $0xb8] sm:$0xff]
        %v444 = vld [vmem:[%s320 + $0xc0] sm:$0xff]
        %v445 = vld [vmem:[%s320 + $0xc8] sm:$0xff]
        %v446 = vld [vmem:[%s320 + $0xd0] sm:$0xff]
        %v447 = vld [vmem:[%s320 + $0xd8] sm:$0xff]
        %v448 = vld [vmem:[%s320 + $0xe0] sm:$0xff]
        %v449 = vld [vmem:[%s320 + $0xe8] sm:$0xff]
        %v450 = vld [vmem:[%s320 + $0xf0] sm:$0xff]
        %v451 = vld [vmem:[%s320 + $0xf8] sm:$0xff]
        %v452 = vld [vmem:[%s329] sm:$0x3]
        %v453 = vld [vmem:[%s406] sm:$0xff]
        %v454 = vld [vmem:[%s406 + $0x8] sm:$0xff]
        %v455 = vld [vmem:[%s406 + $0x10] sm:$0xff]
        %v456 = vld [vmem:[%s406 + $0x18] sm:$0xff]
        %v457 = vld [vmem:[%s406 + $0x20] sm:$0xff]
        %v458 = vld [vmem:[%s406 + $0x28] sm:$0xff]
        %v459 = vld [vmem:[%s406 + $0x30] sm:$0xff]
        %v460 = vld [vmem:[%s406 + $0x38] sm:$0xff]
        %v461 = vld [vmem:[%s406 + $0x40] sm:$0xff]
        %v462 = vld [vmem:[%s406 + $0x48] sm:$0xff]
        %v463 = vld [vmem:[%s406 + $0x50] sm:$0xff]
        %v464 = vld [vmem:[%s406 + $0x58] sm:$0xff]
        %v465 = vld [vmem:[%s406 + $0x60] sm:$0xff]
        %v466 = vld [vmem:[%s406 + $0x68] sm:$0xff]
        %v467 = vld [vmem:[%s406 + $0x70] sm:$0xff]
        %v468 = vld [vmem:[%s406 + $0x78] sm:$0xff]
        %v469 = vld [vmem:[%s392] sm:$0x1]
        %vm470 = vcmp.eq.s32.totalorder %v420, 0
        %vm471 = vcmp.eq.s32.totalorder %v421, 0
        %vm472 = vcmp.eq.s32.totalorder %v422, 0
        %vm473 = vcmp.eq.s32.totalorder %v423, 0
        %vm474 = vcmp.eq.s32.totalorder %v424, 0
        %vm475 = vcmp.eq.s32.totalorder %v425, 0
        %vm476 = vcmp.eq.s32.totalorder %v426, 0
        %vm477 = vcmp.eq.s32.totalorder %v427, 0
        %vm478 = vcmp.eq.s32.totalorder %v428, 0
        %vm479 = vcmp.eq.s32.totalorder %v429, 0
        %vm480 = vcmp.eq.s32.totalorder %v430, 0
        %vm481 = vcmp.eq.s32.totalorder %v431, 0
        %vm482 = vcmp.eq.s32.totalorder %v432, 0
        %vm483 = vcmp.eq.s32.totalorder %v433, 0
        %vm484 = vcmp.eq.s32.totalorder %v434, 0
        %vm485 = vcmp.eq.s32.totalorder %v435, 0
        %vm486 = vcmp.eq.s32.totalorder %v436, 0
        %vm487 = vcmp.eq.s32.totalorder %v437, 0
        %vm488 = vcmp.eq.s32.totalorder %v438, 0
        %vm489 = vcmp.eq.s32.totalorder %v439, 0
        %vm490 = vcmp.eq.s32.totalorder %v440, 0
        %vm491 = vcmp.eq.s32.totalorder %v441, 0
        %vm492 = vcmp.eq.s32.totalorder %v442, 0
        %vm493 = vcmp.eq.s32.totalorder %v443, 0
        %vm494 = vcmp.eq.s32.totalorder %v444, 0
        %vm495 = vcmp.eq.s32.totalorder %v445, 0
        %vm496 = vcmp.eq.s32.totalorder %v446, 0
        %vm497 = vcmp.eq.s32.totalorder %v447, 0
        %vm498 = vcmp.eq.s32.totalorder %v448, 0
        %vm499 = vcmp.eq.s32.totalorder %v449, 0
        %vm500 = vcmp.eq.s32.totalorder %v450, 0
        %vm501 = vcmp.eq.s32.totalorder %v451, 0
        %v503 = vlaneseq
        %v504 = vshrl.u32 %v503, 7
        %v505 = vsub.s32 0, %v504
        %v506 = vrot.slane %v469, %v505
        %507 = vset.pattern.permute.xlu0 0
        %508 = vperm.xlu0 %507, %v506
        %v509 = vpop.permute.xlu0 %508
        %v511 = vsel %vm470, %v509, 0.0
        %v512 = vsel %vm471, %v509, 0.0
        %v513 = vsel %vm472, %v509, 0.0
        %v514 = vsel %vm473, %v509, 0.0
        %v515 = vsel %vm474, %v509, 0.0
        %v516 = vsel %vm475, %v509, 0.0
        %v517 = vsel %vm476, %v509, 0.0
        %v518 = vsel %vm477, %v509, 0.0
        %v519 = vsel %vm478, %v509, 0.0
        %v520 = vsel %vm479, %v509, 0.0
        %v521 = vsel %vm480, %v509, 0.0
        %v522 = vsel %vm481, %v509, 0.0
        %v523 = vsel %vm482, %v509, 0.0
        %v524 = vsel %vm483, %v509, 0.0
        %v525 = vsel %vm484, %v509, 0.0
        %v526 = vsel %vm485, %v509, 0.0
        %v527 = vsel %vm486, %v509, 0.0
        %v528 = vsel %vm487, %v509, 0.0
        %v529 = vsel %vm488, %v509, 0.0
        %v530 = vsel %vm489, %v509, 0.0
        %v531 = vsel %vm490, %v509, 0.0
        %v532 = vsel %vm491, %v509, 0.0
        %v533 = vsel %vm492, %v509, 0.0
        %v534 = vsel %vm493, %v509, 0.0
        %v535 = vsel %vm494, %v509, 0.0
        %v536 = vsel %vm495, %v509, 0.0
        %v537 = vsel %vm496, %v509, 0.0
        %v538 = vsel %vm497, %v509, 0.0
        %v539 = vsel %vm498, %v509, 0.0
        %v540 = vsel %vm499, %v509, 0.0
        %v541 = vsel %vm500, %v509, 0.0
        %v542 = vsel %vm501, %v509, 0.0
        %vm543 = vcmp.eq.s32.totalorder %v420, 1
        %vm544 = vcmp.eq.s32.totalorder %v421, 1
        %vm545 = vcmp.eq.s32.totalorder %v422, 1
        %vm546 = vcmp.eq.s32.totalorder %v423, 1
        %vm547 = vcmp.eq.s32.totalorder %v424, 1
        %vm548 = vcmp.eq.s32.totalorder %v425, 1
        %vm549 = vcmp.eq.s32.totalorder %v426, 1
        %vm550 = vcmp.eq.s32.totalorder %v427, 1
        %vm551 = vcmp.eq.s32.totalorder %v428, 1
        %vm552 = vcmp.eq.s32.totalorder %v429, 1
        %vm553 = vcmp.eq.s32.totalorder %v430, 1
        %vm554 = vcmp.eq.s32.totalorder %v431, 1
        %vm555 = vcmp.eq.s32.totalorder %v432, 1
        %vm556 = vcmp.eq.s32.totalorder %v433, 1
        %vm557 = vcmp.eq.s32.totalorder %v434, 1
        %vm558 = vcmp.eq.s32.totalorder %v435, 1
        %vm559 = vcmp.eq.s32.totalorder %v436, 1
        %vm560 = vcmp.eq.s32.totalorder %v437, 1
        %vm561 = vcmp.eq.s32.totalorder %v438, 1
        %vm562 = vcmp.eq.s32.totalorder %v439, 1
        %vm563 = vcmp.eq.s32.totalorder %v440, 1
        %vm564 = vcmp.eq.s32.totalorder %v441, 1
        %vm565 = vcmp.eq.s32.totalorder %v442, 1
        %vm566 = vcmp.eq.s32.totalorder %v443, 1
        %vm567 = vcmp.eq.s32.totalorder %v444, 1
        %vm568 = vcmp.eq.s32.totalorder %v445, 1
        %vm569 = vcmp.eq.s32.totalorder %v446, 1
        %vm570 = vcmp.eq.s32.totalorder %v447, 1
        %vm571 = vcmp.eq.s32.totalorder %v448, 1
        %vm572 = vcmp.eq.s32.totalorder %v449, 1
        %vm573 = vcmp.eq.s32.totalorder %v450, 1
        %vm574 = vcmp.eq.s32.totalorder %v451, 1
        %575 = vset.pattern.permute.xlu0 1
        %576 = vperm.xlu0 %575, %v506
        %v577 = vpop.permute.xlu0 %576
        %v579 = vsel %vm543, %v577, %v511
        %v580 = vsel %vm544, %v577, %v512
        %v581 = vsel %vm545, %v577, %v513
        %v582 = vsel %vm546, %v577, %v514
        %v583 = vsel %vm547, %v577, %v515
        %v584 = vsel %vm548, %v577, %v516
        %v585 = vsel %vm549, %v577, %v517
        %v586 = vsel %vm550, %v577, %v518
        %v587 = vsel %vm551, %v577, %v519
        %v588 = vsel %vm552, %v577, %v520
        %v589 = vsel %vm553, %v577, %v521
        %v590 = vsel %vm554, %v577, %v522
        %v591 = vsel %vm555, %v577, %v523
        %v592 = vsel %vm556, %v577, %v524
        %v593 = vsel %vm557, %v577, %v525
        %v594 = vsel %vm558, %v577, %v526
        %v595 = vsel %vm559, %v577, %v527
        %v596 = vsel %vm560, %v577, %v528
        %v597 = vsel %vm561, %v577, %v529
        %v598 = vsel %vm562, %v577, %v530
        %v599 = vsel %vm563, %v577, %v531
        %v600 = vsel %vm564, %v577, %v532
        %v601 = vsel %vm565, %v577, %v533
        %v602 = vsel %vm566, %v577, %v534
        %v603 = vsel %vm567, %v577, %v535
        %v604 = vsel %vm568, %v577, %v536
        %v605 = vsel %vm569, %v577, %v537
        %v606 = vsel %vm570, %v577, %v538
        %v607 = vsel %vm571, %v577, %v539
        %v608 = vsel %vm572, %v577, %v540
        %v609 = vsel %vm573, %v577, %v541
        %v610 = vsel %vm574, %v577, %v542
        %vm611 = vcmp.eq.s32.totalorder %v420, 2
        %vm612 = vcmp.eq.s32.totalorder %v421, 2
        %vm613 = vcmp.eq.s32.totalorder %v422, 2
        %vm614 = vcmp.eq.s32.totalorder %v423, 2
        %vm615 = vcmp.eq.s32.totalorder %v424, 2
        %vm616 = vcmp.eq.s32.totalorder %v425, 2
        %vm617 = vcmp.eq.s32.totalorder %v426, 2
        %vm618 = vcmp.eq.s32.totalorder %v427, 2
        %vm619 = vcmp.eq.s32.totalorder %v428, 2
        %vm620 = vcmp.eq.s32.totalorder %v429, 2
        %vm621 = vcmp.eq.s32.totalorder %v430, 2
        %vm622 = vcmp.eq.s32.totalorder %v431, 2
        %vm623 = vcmp.eq.s32.totalorder %v432, 2
        %vm624 = vcmp.eq.s32.totalorder %v433, 2
        %vm625 = vcmp.eq.s32.totalorder %v434, 2
        %vm626 = vcmp.eq.s32.totalorder %v435, 2
        %vm627 = vcmp.eq.s32.totalorder %v436, 2
        %vm628 = vcmp.eq.s32.totalorder %v437, 2
        %vm629 = vcmp.eq.s32.totalorder %v438, 2
        %vm630 = vcmp.eq.s32.totalorder %v439, 2
        %vm631 = vcmp.eq.s32.totalorder %v440, 2
        %vm632 = vcmp.eq.s32.totalorder %v441, 2
        %vm633 = vcmp.eq.s32.totalorder %v442, 2
        %vm634 = vcmp.eq.s32.totalorder %v443, 2
        %vm635 = vcmp.eq.s32.totalorder %v444, 2
        %vm636 = vcmp.eq.s32.totalorder %v445, 2
        %vm637 = vcmp.eq.s32.totalorder %v446, 2
        %vm638 = vcmp.eq.s32.totalorder %v447, 2
        %vm639 = vcmp.eq.s32.totalorder %v448, 2
        %vm640 = vcmp.eq.s32.totalorder %v449, 2
        %vm641 = vcmp.eq.s32.totalorder %v450, 2
        %vm642 = vcmp.eq.s32.totalorder %v451, 2
        %643 = vset.pattern.permute.xlu0 2
        %644 = vperm.xlu0 %643, %v506
        %v645 = vpop.permute.xlu0 %644
        %v647 = vsel %vm611, %v645, %v579
        %v648 = vsel %vm612, %v645, %v580
        %v649 = vsel %vm613, %v645, %v581
        %v650 = vsel %vm614, %v645, %v582
        %v651 = vsel %vm615, %v645, %v583
        %v652 = vsel %vm616, %v645, %v584
        %v653 = vsel %vm617, %v645, %v585
        %v654 = vsel %vm618, %v645, %v586
        %v655 = vsel %vm619, %v645, %v587
        %v656 = vsel %vm620, %v645, %v588
        %v657 = vsel %vm621, %v645, %v589
        %v658 = vsel %vm622, %v645, %v590
        %v659 = vsel %vm623, %v645, %v591
        %v660 = vsel %vm624, %v645, %v592
        %v661 = vsel %vm625, %v645, %v593
        %v662 = vsel %vm626, %v645, %v594
        %v663 = vsel %vm627, %v645, %v595
        %v664 = vsel %vm628, %v645, %v596
        %v665 = vsel %vm629, %v645, %v597
        %v666 = vsel %vm630, %v645, %v598
        %v667 = vsel %vm631, %v645, %v599
        %v668 = vsel %vm632, %v645, %v600
        %v669 = vsel %vm633, %v645, %v601
        %v670 = vsel %vm634, %v645, %v602
        %v671 = vsel %vm635, %v645, %v603
        %v672 = vsel %vm636, %v645, %v604
        %v673 = vsel %vm637, %v645, %v605
        %v674 = vsel %vm638, %v645, %v606
        %v675 = vsel %vm639, %v645, %v607
        %v676 = vsel %vm640, %v645, %v608
        %v677 = vsel %vm641, %v645, %v609
        %v678 = vsel %vm642, %v645, %v610
        %680 = vset.pattern.permute.xlu0 0
        %681 = vperm.xlu0 %680, %v453
        %v682 = vpop.permute.xlu0 %681
        %685 = vset.pattern.permute.xlu0 0
        %686 = vperm.xlu0 %685, %v454
        %v687 = vpop.permute.xlu0 %686
        %690 = vset.pattern.permute.xlu0 0
        %691 = vperm.xlu0 %690, %v455
        %v692 = vpop.permute.xlu0 %691
        %695 = vset.pattern.permute.xlu0 0
        %696 = vperm.xlu0 %695, %v456
        %v697 = vpop.permute.xlu0 %696
        %700 = vset.pattern.permute.xlu0 0
        %701 = vperm.xlu0 %700, %v457
        %v702 = vpop.permute.xlu0 %701
        %705 = vset.pattern.permute.xlu0 0
        %706 = vperm.xlu0 %705, %v458
        %v707 = vpop.permute.xlu0 %706
        %710 = vset.pattern.permute.xlu0 0
        %711 = vperm.xlu0 %710, %v459
        %v712 = vpop.permute.xlu0 %711
        %715 = vset.pattern.permute.xlu0 0
        %716 = vperm.xlu0 %715, %v460
        %v717 = vpop.permute.xlu0 %716
        %720 = vset.pattern.permute.xlu0 0
        %721 = vperm.xlu0 %720, %v461
        %v722 = vpop.permute.xlu0 %721
        %725 = vset.pattern.permute.xlu0 0
        %726 = vperm.xlu0 %725, %v462
        %v727 = vpop.permute.xlu0 %726
        %730 = vset.pattern.permute.xlu0 0
        %731 = vperm.xlu0 %730, %v463
        %v732 = vpop.permute.xlu0 %731
        %735 = vset.pattern.permute.xlu0 0
        %736 = vperm.xlu0 %735, %v464
        %v737 = vpop.permute.xlu0 %736
        %740 = vset.pattern.permute.xlu0 0
        %741 = vperm.xlu0 %740, %v465
        %v742 = vpop.permute.xlu0 %741
        %745 = vset.pattern.permute.xlu0 0
        %746 = vperm.xlu0 %745, %v466
        %v747 = vpop.permute.xlu0 %746
        %750 = vset.pattern.permute.xlu0 0
        %751 = vperm.xlu0 %750, %v467
        %v752 = vpop.permute.xlu0 %751
        %755 = vset.pattern.permute.xlu0 0
        %756 = vperm.xlu0 %755, %v468
        %v757 = vpop.permute.xlu0 %756
        %v760 = vlaneseq
        %v761 = vshrl.u32 %v760, 7
        %v762 = vsub.s32 0, %v761
        %v763 = vrot.slane %v452, %v762
        %v764 = vlaneseq
        %v765 = vshrl.u32 %v764, 7
        %v766 = vsub.s32 1, %v765
        %v767 = vrot.slane %v452, %v766
        %v770 = vadd.f32 %v682, %v763
        %v771 = vadd.f32 %v682, %v767
        %v772 = vadd.f32 %v687, %v763
        %v773 = vadd.f32 %v687, %v767
        %v774 = vadd.f32 %v692, %v763
        %v775 = vadd.f32 %v692, %v767
        %v776 = vadd.f32 %v697, %v763
        %v777 = vadd.f32 %v697, %v767
        %v778 = vadd.f32 %v702, %v763
        %v779 = vadd.f32 %v702, %v767
        %v780 = vadd.f32 %v707, %v763
        %v781 = vadd.f32 %v707, %v767
        %v782 = vadd.f32 %v712, %v763
        %v783 = vadd.f32 %v712, %v767
        %v784 = vadd.f32 %v717, %v763
        %v785 = vadd.f32 %v717, %v767
        %v786 = vadd.f32 %v722, %v763
        %v787 = vadd.f32 %v722, %v767
        %v788 = vadd.f32 %v727, %v763
        %v789 = vadd.f32 %v727, %v767
        %v790 = vadd.f32 %v732, %v763
        %v791 = vadd.f32 %v732, %v767
        %v792 = vadd.f32 %v737, %v763
        %v793 = vadd.f32 %v737, %v767
        %v794 = vadd.f32 %v742, %v763
        %v795 = vadd.f32 %v742, %v767
        %v796 = vadd.f32 %v747, %v763
        %v797 = vadd.f32 %v747, %v767
        %v798 = vadd.f32 %v752, %v763
        %v799 = vadd.f32 %v752, %v767
        %v800 = vadd.f32 %v757, %v763
        %v801 = vadd.f32 %v757, %v767
        %v802 = vadd.f32 %v770, %v647
        %v803 = vadd.f32 %v771, %v648
        %v804 = vadd.f32 %v772, %v649
        %v805 = vadd.f32 %v773, %v650
        %v806 = vadd.f32 %v774, %v651
        %v807 = vadd.f32 %v775, %v652
        %v808 = vadd.f32 %v776, %v653
        %v809 = vadd.f32 %v777, %v654
        %v810 = vadd.f32 %v778, %v655
        %v811 = vadd.f32 %v779, %v656
        %v812 = vadd.f32 %v780, %v657
        %v813 = vadd.f32 %v781, %v658
        %v814 = vadd.f32 %v782, %v659
        %v815 = vadd.f32 %v783, %v660
        %v816 = vadd.f32 %v784, %v661
        %v817 = vadd.f32 %v785, %v662
        %v818 = vadd.f32 %v786, %v663
        %v819 = vadd.f32 %v787, %v664
        %v820 = vadd.f32 %v788, %v665
        %v821 = vadd.f32 %v789, %v666
        %v822 = vadd.f32 %v790, %v667
        %v823 = vadd.f32 %v791, %v668
        %v824 = vadd.f32 %v792, %v669
        %v825 = vadd.f32 %v793, %v670
        %v826 = vadd.f32 %v794, %v671
        %v827 = vadd.f32 %v795, %v672
        %v828 = vadd.f32 %v796, %v673
        %v829 = vadd.f32 %v797, %v674
        %v830 = vadd.f32 %v798, %v675
        %v831 = vadd.f32 %v799, %v676
        %v832 = vadd.f32 %v800, %v677
        %v833 = vadd.f32 %v801, %v678
        %v834 = vmul.f32 %v802, 0.2
        %v835 = vmul.f32 %v803, 0.2
        %v836 = vmul.f32 %v804, 0.2
        %v837 = vmul.f32 %v805, 0.2
        %v838 = vmul.f32 %v806, 0.2
        %v839 = vmul.f32 %v807, 0.2
        %v840 = vmul.f32 %v808, 0.2
        %v841 = vmul.f32 %v809, 0.2
        %v842 = vmul.f32 %v810, 0.2
        %v843 = vmul.f32 %v811, 0.2
        %v844 = vmul.f32 %v812, 0.2
        %v845 = vmul.f32 %v813, 0.2
        %v846 = vmul.f32 %v814, 0.2
        %v847 = vmul.f32 %v815, 0.2
        %v848 = vmul.f32 %v816, 0.2
        %v849 = vmul.f32 %v817, 0.2
        %v850 = vmul.f32 %v818, 0.2
        %v851 = vmul.f32 %v819, 0.2
        %v852 = vmul.f32 %v820, 0.2
        %v853 = vmul.f32 %v821, 0.2
        %v854 = vmul.f32 %v822, 0.2
        %v855 = vmul.f32 %v823, 0.2
        %v856 = vmul.f32 %v824, 0.2
        %v857 = vmul.f32 %v825, 0.2
        %v858 = vmul.f32 %v826, 0.2
        %v859 = vmul.f32 %v827, 0.2
        %v860 = vmul.f32 %v828, 0.2
        %v861 = vmul.f32 %v829, 0.2
        %v862 = vmul.f32 %v830, 0.2
        %v863 = vmul.f32 %v831, 0.2
        %v864 = vmul.f32 %v832, 0.2
        %v865 = vmul.f32 %v833, 0.2
        %v866 = vmax.f32 %v802, %v834
        %v867 = vmax.f32 %v803, %v835
        %v868 = vmax.f32 %v804, %v836
        %v869 = vmax.f32 %v805, %v837
        %v870 = vmax.f32 %v806, %v838
        %v871 = vmax.f32 %v807, %v839
        %v872 = vmax.f32 %v808, %v840
        %v873 = vmax.f32 %v809, %v841
        %v874 = vmax.f32 %v810, %v842
        %v875 = vmax.f32 %v811, %v843
        %v876 = vmax.f32 %v812, %v844
        %v877 = vmax.f32 %v813, %v845
        %v878 = vmax.f32 %v814, %v846
        %v879 = vmax.f32 %v815, %v847
        %v880 = vmax.f32 %v816, %v848
        %v881 = vmax.f32 %v817, %v849
        %v882 = vmax.f32 %v818, %v850
        %v883 = vmax.f32 %v819, %v851
        %v884 = vmax.f32 %v820, %v852
        %v885 = vmax.f32 %v821, %v853
        %v886 = vmax.f32 %v822, %v854
        %v887 = vmax.f32 %v823, %v855
        %v888 = vmax.f32 %v824, %v856
        %v889 = vmax.f32 %v825, %v857
        %v890 = vmax.f32 %v826, %v858
        %v891 = vmax.f32 %v827, %v859
        %v892 = vmax.f32 %v828, %v860
        %v893 = vmax.f32 %v829, %v861
        %v894 = vmax.f32 %v830, %v862
        %v895 = vmax.f32 %v831, %v863
        %v896 = vmax.f32 %v832, %v864
        %v897 = vmax.f32 %v833, %v865
        %vm898 = vcmp.ge.s32.totalorder %v420, 0
        %vm899 = vcmp.ge.s32.totalorder %v421, 0
        %vm900 = vcmp.ge.s32.totalorder %v422, 0
        %vm901 = vcmp.ge.s32.totalorder %v423, 0
        %vm902 = vcmp.ge.s32.totalorder %v424, 0
        %vm903 = vcmp.ge.s32.totalorder %v425, 0
        %vm904 = vcmp.ge.s32.totalorder %v426, 0
        %vm905 = vcmp.ge.s32.totalorder %v427, 0
        %vm906 = vcmp.ge.s32.totalorder %v428, 0
        %vm907 = vcmp.ge.s32.totalorder %v429, 0
        %vm908 = vcmp.ge.s32.totalorder %v430, 0
        %vm909 = vcmp.ge.s32.totalorder %v431, 0
        %vm910 = vcmp.ge.s32.totalorder %v432, 0
        %vm911 = vcmp.ge.s32.totalorder %v433, 0
        %vm912 = vcmp.ge.s32.totalorder %v434, 0
        %vm913 = vcmp.ge.s32.totalorder %v435, 0
        %vm914 = vcmp.ge.s32.totalorder %v436, 0
        %vm915 = vcmp.ge.s32.totalorder %v437, 0
        %vm916 = vcmp.ge.s32.totalorder %v438, 0
        %vm917 = vcmp.ge.s32.totalorder %v439, 0
        %vm918 = vcmp.ge.s32.totalorder %v440, 0
        %vm919 = vcmp.ge.s32.totalorder %v441, 0
        %vm920 = vcmp.ge.s32.totalorder %v442, 0
        %vm921 = vcmp.ge.s32.totalorder %v443, 0
        %vm922 = vcmp.ge.s32.totalorder %v444, 0
        %vm923 = vcmp.ge.s32.totalorder %v445, 0
        %vm924 = vcmp.ge.s32.totalorder %v446, 0
        %vm925 = vcmp.ge.s32.totalorder %v447, 0
        %vm926 = vcmp.ge.s32.totalorder %v448, 0
        %vm927 = vcmp.ge.s32.totalorder %v449, 0
        %vm928 = vcmp.ge.s32.totalorder %v450, 0
        %vm929 = vcmp.ge.s32.totalorder %v451, 0
        %v930 = vsel %vm898, %v866, -1e+30
        %v931 = vsel %vm899, %v867, -1e+30
        %v932 = vsel %vm900, %v868, -1e+30
        %v933 = vsel %vm901, %v869, -1e+30
        %v934 = vsel %vm902, %v870, -1e+30
        %v935 = vsel %vm903, %v871, -1e+30
        %v936 = vsel %vm904, %v872, -1e+30
        %v937 = vsel %vm905, %v873, -1e+30
        %v938 = vsel %vm906, %v874, -1e+30
        %v939 = vsel %vm907, %v875, -1e+30
        %v940 = vsel %vm908, %v876, -1e+30
        %v941 = vsel %vm909, %v877, -1e+30
        %v942 = vsel %vm910, %v878, -1e+30
        %v943 = vsel %vm911, %v879, -1e+30
        %v944 = vsel %vm912, %v880, -1e+30
        %v945 = vsel %vm913, %v881, -1e+30
        %v946 = vsel %vm914, %v882, -1e+30
        %v947 = vsel %vm915, %v883, -1e+30
        %v948 = vsel %vm916, %v884, -1e+30
        %v949 = vsel %vm917, %v885, -1e+30
        %v950 = vsel %vm918, %v886, -1e+30
        %v951 = vsel %vm919, %v887, -1e+30
        %v952 = vsel %vm920, %v888, -1e+30
        %v953 = vsel %vm921, %v889, -1e+30
        %v954 = vsel %vm922, %v890, -1e+30
        %v955 = vsel %vm923, %v891, -1e+30
        %v956 = vsel %vm924, %v892, -1e+30
        %v957 = vsel %vm925, %v893, -1e+30
        %v958 = vsel %vm926, %v894, -1e+30
        %v959 = vsel %vm927, %v895, -1e+30
        %v960 = vsel %vm928, %v896, -1e+30
        %v961 = vsel %vm929, %v897, -1e+30
        %v962 = vmax.f32 %v930, %v931
        %963 = vmax.xlane.f32.xlu0 %v962
        %v964 = vpop.xlane.xlu0 %963
        %v965 = vmax.f32 %v932, %v933
        %966 = vmax.xlane.f32.xlu0 %v965
        %v967 = vpop.xlane.xlu0 %966
        %v968 = vmax.f32 %v934, %v935
        %969 = vmax.xlane.f32.xlu0 %v968
        %v970 = vpop.xlane.xlu0 %969
        %v971 = vmax.f32 %v936, %v937
        %972 = vmax.xlane.f32.xlu0 %v971
        %v973 = vpop.xlane.xlu0 %972
        %v974 = vmax.f32 %v938, %v939
        %975 = vmax.xlane.f32.xlu0 %v974
        %v976 = vpop.xlane.xlu0 %975
        %v977 = vmax.f32 %v940, %v941
        %978 = vmax.xlane.f32.xlu0 %v977
        %v979 = vpop.xlane.xlu0 %978
        %v980 = vmax.f32 %v942, %v943
        %981 = vmax.xlane.f32.xlu0 %v980
        %v982 = vpop.xlane.xlu0 %981
        %v983 = vmax.f32 %v944, %v945
        %984 = vmax.xlane.f32.xlu0 %v983
        %v985 = vpop.xlane.xlu0 %984
        %v986 = vmax.f32 %v946, %v947
        %987 = vmax.xlane.f32.xlu0 %v986
        %v988 = vpop.xlane.xlu0 %987
        %v989 = vmax.f32 %v948, %v949
        %990 = vmax.xlane.f32.xlu0 %v989
        %v991 = vpop.xlane.xlu0 %990
        %v992 = vmax.f32 %v950, %v951
        %993 = vmax.xlane.f32.xlu0 %v992
        %v994 = vpop.xlane.xlu0 %993
        %v995 = vmax.f32 %v952, %v953
        %996 = vmax.xlane.f32.xlu0 %v995
        %v997 = vpop.xlane.xlu0 %996
        %v998 = vmax.f32 %v954, %v955
        %999 = vmax.xlane.f32.xlu0 %v998
        %v1000 = vpop.xlane.xlu0 %999
        %v1001 = vmax.f32 %v956, %v957
        %1002 = vmax.xlane.f32.xlu0 %v1001
        %v1003 = vpop.xlane.xlu0 %1002
        %v1004 = vmax.f32 %v958, %v959
        %1005 = vmax.xlane.f32.xlu0 %v1004
        %v1006 = vpop.xlane.xlu0 %1005
        %v1007 = vmax.f32 %v960, %v961
        %1008 = vmax.xlane.f32.xlu0 %v1007
        %v1009 = vpop.xlane.xlu0 %1008
        %v1010 = vsub.f32 %v930, %v964
        %v1011 = vsub.f32 %v931, %v964
        %v1012 = vsub.f32 %v932, %v967
        %v1013 = vsub.f32 %v933, %v967
        %v1014 = vsub.f32 %v934, %v970
        %v1015 = vsub.f32 %v935, %v970
        %v1016 = vsub.f32 %v936, %v973
        %v1017 = vsub.f32 %v937, %v973
        %v1018 = vsub.f32 %v938, %v976
        %v1019 = vsub.f32 %v939, %v976
        %v1020 = vsub.f32 %v940, %v979
        %v1021 = vsub.f32 %v941, %v979
        %v1022 = vsub.f32 %v942, %v982
        %v1023 = vsub.f32 %v943, %v982
        %v1024 = vsub.f32 %v944, %v985
        %v1025 = vsub.f32 %v945, %v985
        %v1026 = vsub.f32 %v946, %v988
        %v1027 = vsub.f32 %v947, %v988
        %v1028 = vsub.f32 %v948, %v991
        %v1029 = vsub.f32 %v949, %v991
        %v1030 = vsub.f32 %v950, %v994
        %v1031 = vsub.f32 %v951, %v994
        %v1032 = vsub.f32 %v952, %v997
        %v1033 = vsub.f32 %v953, %v997
        %v1034 = vsub.f32 %v954, %v1000
        %v1035 = vsub.f32 %v955, %v1000
        %v1036 = vsub.f32 %v956, %v1003
        %v1037 = vsub.f32 %v957, %v1003
        %v1038 = vsub.f32 %v958, %v1006
        %v1039 = vsub.f32 %v959, %v1006
        %v1040 = vsub.f32 %v960, %v1009
        %v1041 = vsub.f32 %v961, %v1009
        %v1042 = vmul.f32 %v1010, 1.442695
        %v1043 = vpow.pop %v1042
        %v1044 = vmul.f32 %v1011, 1.442695
        %v1045 = vpow.pop %v1044
        %v1046 = vmul.f32 %v1012, 1.442695
        %v1047 = vpow.pop %v1046
        %v1048 = vmul.f32 %v1013, 1.442695
        %v1049 = vpow.pop %v1048
        %v1050 = vmul.f32 %v1014, 1.442695
        %v1051 = vpow.pop %v1050
        %v1052 = vmul.f32 %v1015, 1.442695
        %v1053 = vpow.pop %v1052
        %v1054 = vmul.f32 %v1016, 1.442695
        %v1055 = vpow.pop %v1054
        %v1056 = vmul.f32 %v1017, 1.442695
        %v1057 = vpow.pop %v1056
        %v1058 = vmul.f32 %v1018, 1.442695
        %v1059 = vpow.pop %v1058
        %v1060 = vmul.f32 %v1019, 1.442695
        %v1061 = vpow.pop %v1060
        %v1062 = vmul.f32 %v1020, 1.442695
        %v1063 = vpow.pop %v1062
        %v1064 = vmul.f32 %v1021, 1.442695
        %v1065 = vpow.pop %v1064
        %v1066 = vmul.f32 %v1022, 1.442695
        %v1067 = vpow.pop %v1066
        %v1068 = vmul.f32 %v1023, 1.442695
        %v1069 = vpow.pop %v1068
        %v1070 = vmul.f32 %v1024, 1.442695
        %v1071 = vpow.pop %v1070
        %v1072 = vmul.f32 %v1025, 1.442695
        %v1073 = vpow.pop %v1072
        %v1074 = vmul.f32 %v1026, 1.442695
        %v1075 = vpow.pop %v1074
        %v1076 = vmul.f32 %v1027, 1.442695
        %v1077 = vpow.pop %v1076
        %v1078 = vmul.f32 %v1028, 1.442695
        %v1079 = vpow.pop %v1078
        %v1080 = vmul.f32 %v1029, 1.442695
        %v1081 = vpow.pop %v1080
        %v1082 = vmul.f32 %v1030, 1.442695
        %v1083 = vpow.pop %v1082
        %v1084 = vmul.f32 %v1031, 1.442695
        %v1085 = vpow.pop %v1084
        %v1086 = vmul.f32 %v1032, 1.442695
        %v1087 = vpow.pop %v1086
        %v1088 = vmul.f32 %v1033, 1.442695
        %v1089 = vpow.pop %v1088
        %v1090 = vmul.f32 %v1034, 1.442695
        %v1091 = vpow.pop %v1090
        %v1092 = vmul.f32 %v1035, 1.442695
        %v1093 = vpow.pop %v1092
        %v1094 = vmul.f32 %v1036, 1.442695
        %v1095 = vpow.pop %v1094
        %v1096 = vmul.f32 %v1037, 1.442695
        %v1097 = vpow.pop %v1096
        %v1098 = vmul.f32 %v1038, 1.442695
        %v1099 = vpow.pop %v1098
        %v1100 = vmul.f32 %v1039, 1.442695
        %v1101 = vpow.pop %v1100
        %v1102 = vmul.f32 %v1040, 1.442695
        %v1103 = vpow.pop %v1102
        %v1104 = vmul.f32 %v1041, 1.442695
        %v1105 = vpow.pop %v1104
        %v1106 = vsel %vm898, %v1043, 0.0
        %v1107 = vsel %vm899, %v1045, 0.0
        %v1108 = vsel %vm900, %v1047, 0.0
        %v1109 = vsel %vm901, %v1049, 0.0
        %v1110 = vsel %vm902, %v1051, 0.0
        %v1111 = vsel %vm903, %v1053, 0.0
        %v1112 = vsel %vm904, %v1055, 0.0
        %v1113 = vsel %vm905, %v1057, 0.0
        %v1114 = vsel %vm906, %v1059, 0.0
        %v1115 = vsel %vm907, %v1061, 0.0
        %v1116 = vsel %vm908, %v1063, 0.0
        %v1117 = vsel %vm909, %v1065, 0.0
        %v1118 = vsel %vm910, %v1067, 0.0
        %v1119 = vsel %vm911, %v1069, 0.0
        %v1120 = vsel %vm912, %v1071, 0.0
        %v1121 = vsel %vm913, %v1073, 0.0
        %v1122 = vsel %vm914, %v1075, 0.0
        %v1123 = vsel %vm915, %v1077, 0.0
        %v1124 = vsel %vm916, %v1079, 0.0
        %v1125 = vsel %vm917, %v1081, 0.0
        %v1126 = vsel %vm918, %v1083, 0.0
        %v1127 = vsel %vm919, %v1085, 0.0
        %v1128 = vsel %vm920, %v1087, 0.0
        %v1129 = vsel %vm921, %v1089, 0.0
        %v1130 = vsel %vm922, %v1091, 0.0
        %v1131 = vsel %vm923, %v1093, 0.0
        %v1132 = vsel %vm924, %v1095, 0.0
        %v1133 = vsel %vm925, %v1097, 0.0
        %v1134 = vsel %vm926, %v1099, 0.0
        %v1135 = vsel %vm927, %v1101, 0.0
        %v1136 = vsel %vm928, %v1103, 0.0
        %v1137 = vsel %vm929, %v1105, 0.0
        %v1138 = vadd.f32 %v1106, %v1107
        %1139 = vadd.xlane.f32.xlu0 %v1138
        %v1140 = vpop.xlane.xlu0 %1139
        %v1141 = vadd.f32 %v1108, %v1109
        %1142 = vadd.xlane.f32.xlu0 %v1141
        %v1143 = vpop.xlane.xlu0 %1142
        %v1144 = vadd.f32 %v1110, %v1111
        %1145 = vadd.xlane.f32.xlu0 %v1144
        %v1146 = vpop.xlane.xlu0 %1145
        %v1147 = vadd.f32 %v1112, %v1113
        %1148 = vadd.xlane.f32.xlu0 %v1147
        %v1149 = vpop.xlane.xlu0 %1148
        %v1150 = vadd.f32 %v1114, %v1115
        %1151 = vadd.xlane.f32.xlu0 %v1150
        %v1152 = vpop.xlane.xlu0 %1151
        %v1153 = vadd.f32 %v1116, %v1117
        %1154 = vadd.xlane.f32.xlu0 %v1153
        %v1155 = vpop.xlane.xlu0 %1154
        %v1156 = vadd.f32 %v1118, %v1119
        %1157 = vadd.xlane.f32.xlu0 %v1156
        %v1158 = vpop.xlane.xlu0 %1157
        %v1159 = vadd.f32 %v1120, %v1121
        %1160 = vadd.xlane.f32.xlu0 %v1159
        %v1161 = vpop.xlane.xlu0 %1160
        %v1162 = vadd.f32 %v1122, %v1123
        %1163 = vadd.xlane.f32.xlu0 %v1162
        %v1164 = vpop.xlane.xlu0 %1163
        %v1165 = vadd.f32 %v1124, %v1125
        %1166 = vadd.xlane.f32.xlu0 %v1165
        %v1167 = vpop.xlane.xlu0 %1166
        %v1168 = vadd.f32 %v1126, %v1127
        %1169 = vadd.xlane.f32.xlu0 %v1168
        %v1170 = vpop.xlane.xlu0 %1169
        %v1171 = vadd.f32 %v1128, %v1129
        %1172 = vadd.xlane.f32.xlu0 %v1171
        %v1173 = vpop.xlane.xlu0 %1172
        %v1174 = vadd.f32 %v1130, %v1131
        %1175 = vadd.xlane.f32.xlu0 %v1174
        %v1176 = vpop.xlane.xlu0 %1175
        %v1177 = vadd.f32 %v1132, %v1133
        %1178 = vadd.xlane.f32.xlu0 %v1177
        %v1179 = vpop.xlane.xlu0 %1178
        %v1180 = vadd.f32 %v1134, %v1135
        %1181 = vadd.xlane.f32.xlu0 %v1180
        %v1182 = vpop.xlane.xlu0 %1181
        %v1183 = vadd.f32 %v1136, %v1137
        %1184 = vadd.xlane.f32.xlu0 %v1183
        %v1185 = vpop.xlane.xlu0 %1184
        %v1186 = vmax.f32 %v1140, 1e-30
        %v1187 = vmax.f32 %v1143, 1e-30
        %v1188 = vmax.f32 %v1146, 1e-30
        %v1189 = vmax.f32 %v1149, 1e-30
        %v1190 = vmax.f32 %v1152, 1e-30
        %v1191 = vmax.f32 %v1155, 1e-30
        %v1192 = vmax.f32 %v1158, 1e-30
        %v1193 = vmax.f32 %v1161, 1e-30
        %v1194 = vmax.f32 %v1164, 1e-30
        %v1195 = vmax.f32 %v1167, 1e-30
        %v1196 = vmax.f32 %v1170, 1e-30
        %v1197 = vmax.f32 %v1173, 1e-30
        %v1198 = vmax.f32 %v1176, 1e-30
        %v1199 = vmax.f32 %v1179, 1e-30
        %v1200 = vmax.f32 %v1182, 1e-30
        %v1201 = vmax.f32 %v1185, 1e-30
        %v1202 = vrcp.pop %v1186
        %v1203 = vrcp.pop %v1187
        %v1204 = vrcp.pop %v1188
        %v1205 = vrcp.pop %v1189
        %v1206 = vrcp.pop %v1190
        %v1207 = vrcp.pop %v1191
        %v1208 = vrcp.pop %v1192
        %v1209 = vrcp.pop %v1193
        %v1210 = vrcp.pop %v1194
        %v1211 = vrcp.pop %v1195
        %v1212 = vrcp.pop %v1196
        %v1213 = vrcp.pop %v1197
        %v1214 = vrcp.pop %v1198
        %v1215 = vrcp.pop %v1199
        %v1216 = vrcp.pop %v1200
        %v1217 = vrcp.pop %v1201
        %v1218 = vmul.f32 %v1106, %v1202
        %v1219 = vmul.f32 %v1107, %v1202
        %v1220 = vmul.f32 %v1108, %v1203
        %v1221 = vmul.f32 %v1109, %v1203
        %v1222 = vmul.f32 %v1110, %v1204
        %v1223 = vmul.f32 %v1111, %v1204
        %v1224 = vmul.f32 %v1112, %v1205
        %v1225 = vmul.f32 %v1113, %v1205
        %v1226 = vmul.f32 %v1114, %v1206
        %v1227 = vmul.f32 %v1115, %v1206
        %v1228 = vmul.f32 %v1116, %v1207
        %v1229 = vmul.f32 %v1117, %v1207
        %v1230 = vmul.f32 %v1118, %v1208
        %v1231 = vmul.f32 %v1119, %v1208
        %v1232 = vmul.f32 %v1120, %v1209
        %v1233 = vmul.f32 %v1121, %v1209
        %v1234 = vmul.f32 %v1122, %v1210
        %v1235 = vmul.f32 %v1123, %v1210
        %v1236 = vmul.f32 %v1124, %v1211
        %v1237 = vmul.f32 %v1125, %v1211
        %v1238 = vmul.f32 %v1126, %v1212
        %v1239 = vmul.f32 %v1127, %v1212
        %v1240 = vmul.f32 %v1128, %v1213
        %v1241 = vmul.f32 %v1129, %v1213
        %v1242 = vmul.f32 %v1130, %v1214
        %v1243 = vmul.f32 %v1131, %v1214
        %v1244 = vmul.f32 %v1132, %v1215
        %v1245 = vmul.f32 %v1133, %v1215
        %v1246 = vmul.f32 %v1134, %v1216
        %v1247 = vmul.f32 %v1135, %v1216
        %v1248 = vmul.f32 %v1136, %v1217
        %v1249 = vmul.f32 %v1137, %v1217
        %1250 = vst [vmem:[%s388] sm:$0xff] %v1218
        %1251 = vst [vmem:[%s388 + $0x8] sm:$0xff] %v1219
        %1252 = vst [vmem:[%s388 + $0x10] sm:$0xff] %v1220
        %1253 = vst [vmem:[%s388 + $0x18] sm:$0xff] %v1221
        %1254 = vst [vmem:[%s388 + $0x20] sm:$0xff] %v1222
        %1255 = vst [vmem:[%s388 + $0x28] sm:$0xff] %v1223
        %1256 = vst [vmem:[%s388 + $0x30] sm:$0xff] %v1224
        %1257 = vst [vmem:[%s388 + $0x38] sm:$0xff] %v1225
        %1258 = vst [vmem:[%s388 + $0x40] sm:$0xff] %v1226
        %1259 = vst [vmem:[%s388 + $0x48] sm:$0xff] %v1227
        %1260 = vst [vmem:[%s388 + $0x50] sm:$0xff] %v1228
        %1261 = vst [vmem:[%s388 + $0x58] sm:$0xff] %v1229
        %1262 = vst [vmem:[%s388 + $0x60] sm:$0xff] %v1230
        %1263 = vst [vmem:[%s388 + $0x68] sm:$0xff] %v1231
        %1264 = vst [vmem:[%s388 + $0x70] sm:$0xff] %v1232
        %1265 = vst [vmem:[%s388 + $0x78] sm:$0xff] %v1233
        %1266 = vst [vmem:[%s388 + $0x80] sm:$0xff] %v1234
        %1267 = vst [vmem:[%s388 + $0x88] sm:$0xff] %v1235
        %1268 = vst [vmem:[%s388 + $0x90] sm:$0xff] %v1236
        %1269 = vst [vmem:[%s388 + $0x98] sm:$0xff] %v1237
        %1270 = vst [vmem:[%s388 + $0xa0] sm:$0xff] %v1238
        %1271 = vst [vmem:[%s388 + $0xa8] sm:$0xff] %v1239
        %1272 = vst [vmem:[%s388 + $0xb0] sm:$0xff] %v1240
        %1273 = vst [vmem:[%s388 + $0xb8] sm:$0xff] %v1241
        %1274 = vst [vmem:[%s388 + $0xc0] sm:$0xff] %v1242
        %1275 = vst [vmem:[%s388 + $0xc8] sm:$0xff] %v1243
        %1276 = vst [vmem:[%s388 + $0xd0] sm:$0xff] %v1244
        %1277 = vst [vmem:[%s388 + $0xd8] sm:$0xff] %v1245
        %1278 = vst [vmem:[%s388 + $0xe0] sm:$0xff] %v1246
        %1279 = vst [vmem:[%s388 + $0xe8] sm:$0xff] %v1247
        %1280 = vst [vmem:[%s388 + $0xf0] sm:$0xff] %v1248
        %1281 = vst [vmem:[%s388 + $0xf8] sm:$0xff] %v1249
        %v1282 = vpack.c.bf16 %v1220, %v1218
        %v1283 = vpack.c.bf16 %v1221, %v1219
        %v1284 = vpack.c.bf16 %v1224, %v1222
        %v1285 = vpack.c.bf16 %v1225, %v1223
        %v1286 = vpack.c.bf16 %v1228, %v1226
        %v1287 = vpack.c.bf16 %v1229, %v1227
        %v1288 = vpack.c.bf16 %v1232, %v1230
        %v1289 = vpack.c.bf16 %v1233, %v1231
        %v1290 = vpack.c.bf16 %v1236, %v1234
        %v1291 = vpack.c.bf16 %v1237, %v1235
        %v1292 = vpack.c.bf16 %v1240, %v1238
        %v1293 = vpack.c.bf16 %v1241, %v1239
        %v1294 = vpack.c.bf16 %v1244, %v1242
        %v1295 = vpack.c.bf16 %v1245, %v1243
        %v1296 = vpack.c.bf16 %v1248, %v1246
        %v1297 = vpack.c.bf16 %v1249, %v1247
        %v1298 = vld [vmem:[%s397] sm:$0xf]
        %v1299 = vld [vmem:[%s397 + $0x4] sm:$0xf]
        %v1300 = vld [vmem:[%s397 + $0x8] sm:$0xf]
        %v1301 = vld [vmem:[%s397 + $0xc] sm:$0xf]
        %v1302 = vld [vmem:[%s397 + $0x10] sm:$0xf]
        %v1303 = vld [vmem:[%s397 + $0x14] sm:$0xf]
        %v1304 = vld [vmem:[%s397 + $0x18] sm:$0xf]
        %v1305 = vld [vmem:[%s397 + $0x1c] sm:$0xf]
        %v1306 = vld [vmem:[%s397 + $0x20] sm:$0xf]
        %v1307 = vld [vmem:[%s397 + $0x24] sm:$0xf]
        %v1308 = vld [vmem:[%s397 + $0x28] sm:$0xf]
        %v1309 = vld [vmem:[%s397 + $0x2c] sm:$0xf]
        %v1310 = vld [vmem:[%s397 + $0x30] sm:$0xf]
        %v1311 = vld [vmem:[%s397 + $0x34] sm:$0xf]
        %v1312 = vld [vmem:[%s397 + $0x38] sm:$0xf]
        %v1313 = vld [vmem:[%s397 + $0x3c] sm:$0xf]
        %v1314 = vld [vmem:[%s397 + $0x40] sm:$0xf]
        %v1315 = vld [vmem:[%s397 + $0x44] sm:$0xf]
        %v1316 = vld [vmem:[%s397 + $0x48] sm:$0xf]
        %v1317 = vld [vmem:[%s397 + $0x4c] sm:$0xf]
        %v1318 = vld [vmem:[%s397 + $0x50] sm:$0xf]
        %v1319 = vld [vmem:[%s397 + $0x54] sm:$0xf]
        %v1320 = vld [vmem:[%s397 + $0x58] sm:$0xf]
        %v1321 = vld [vmem:[%s397 + $0x5c] sm:$0xf]
        %v1322 = vld [vmem:[%s397 + $0x60] sm:$0xf]
        %v1323 = vld [vmem:[%s397 + $0x64] sm:$0xf]
        %v1324 = vld [vmem:[%s397 + $0x68] sm:$0xf]
        %v1325 = vld [vmem:[%s397 + $0x6c] sm:$0xf]
        %v1326 = vld [vmem:[%s397 + $0x70] sm:$0xf]
        %v1327 = vld [vmem:[%s397 + $0x74] sm:$0xf]
        %v1328 = vld [vmem:[%s397 + $0x78] sm:$0xf]
        %v1329 = vld [vmem:[%s397 + $0x7c] sm:$0xf]
        %v1362 = vunpack.c.l.b16 %v1298
        %v1363 = vunpack.c.l.b16 %v1299
        %v1364 = vunpack.c.l.b16 %v1300
        %v1365 = vunpack.c.l.b16 %v1301
        %v1366 = vunpack.c.l.b16 %v1302
        %v1367 = vunpack.c.l.b16 %v1303
        %v1368 = vunpack.c.l.b16 %v1304
        %v1369 = vunpack.c.l.b16 %v1305
        %v1370 = vunpack.c.l.b16 %v1306
        %v1371 = vunpack.c.l.b16 %v1307
        %v1372 = vunpack.c.l.b16 %v1308
        %v1373 = vunpack.c.l.b16 %v1309
        %v1374 = vunpack.c.l.b16 %v1310
        %v1375 = vunpack.c.l.b16 %v1311
        %v1376 = vunpack.c.l.b16 %v1312
        %v1377 = vunpack.c.l.b16 %v1313
        %v1378 = vunpack.c.l.b16 %v1314
        %v1379 = vunpack.c.l.b16 %v1315
        %v1380 = vunpack.c.l.b16 %v1316
        %v1381 = vunpack.c.l.b16 %v1317
        %v1382 = vunpack.c.l.b16 %v1318
        %v1383 = vunpack.c.l.b16 %v1319
        %v1384 = vunpack.c.l.b16 %v1320
        %v1385 = vunpack.c.l.b16 %v1321
        %v1386 = vunpack.c.l.b16 %v1322
        %v1387 = vunpack.c.l.b16 %v1323
        %v1388 = vunpack.c.l.b16 %v1324
        %v1389 = vunpack.c.l.b16 %v1325
        %v1390 = vunpack.c.l.b16 %v1326
        %v1391 = vunpack.c.l.b16 %v1327
        %v1392 = vunpack.c.l.b16 %v1328
        %v1393 = vunpack.c.l.b16 %v1329
        %v1394 = vpack.c.b16 %v1363, %v1362
        %v1395 = vpack.c.b16 %v1365, %v1364
        %v1396 = vpack.c.b16 %v1367, %v1366
        %v1397 = vpack.c.b16 %v1369, %v1368
        %v1398 = vpack.c.b16 %v1371, %v1370
        %v1399 = vpack.c.b16 %v1373, %v1372
        %v1400 = vpack.c.b16 %v1375, %v1374
        %v1401 = vpack.c.b16 %v1377, %v1376
        %v1402 = vpack.c.b16 %v1379, %v1378
        %v1403 = vpack.c.b16 %v1381, %v1380
        %v1404 = vpack.c.b16 %v1383, %v1382
        %v1405 = vpack.c.b16 %v1385, %v1384
        %v1406 = vpack.c.b16 %v1387, %v1386
        %v1407 = vpack.c.b16 %v1389, %v1388
        %v1408 = vpack.c.b16 %v1391, %v1390
        %v1409 = vpack.c.b16 %v1393, %v1392
        %1426 = vmatprep.subr.bf16.mxu0 0
        %1427 = vmatpush1.bf16.msra.mxu0 %v1394
        %1428 = vmatprep.subr.bf16.mxu0 0
        %1429 = vmatpush1.bf16.msra.mxu0 %v1395
        %1430 = vmatprep.subr.bf16.mxu0 0
        %1431 = vmatpush1.bf16.msra.mxu0 %v1396
        %1432 = vmatprep.subr.bf16.mxu0 0
        %1433 = vmatpush1.bf16.msra.mxu0 %v1397
        %1434 = vmatprep.subr.bf16.mxu0 0
        %1435 = vmatpush1.bf16.msra.mxu0 %v1398
        %1436 = vmatprep.subr.bf16.mxu0 0
        %1437 = vmatpush1.bf16.msra.mxu0 %v1399
        %1438 = vmatprep.subr.bf16.mxu0 0
        %1439 = vmatpush1.bf16.msra.mxu0 %v1400
        %1440 = vmatprep.subr.bf16.mxu0 0
        %1441 = vmatpush1.bf16.msra.mxu0 %v1401
        %1442 = vmatprep.subr.bf16.mxu0 0
        %1443 = vmatpush1.bf16.msra.mxu0 %v1402
        %1444 = vmatprep.subr.bf16.mxu0 0
        %1445 = vmatpush1.bf16.msra.mxu0 %v1403
        %1446 = vmatprep.subr.bf16.mxu0 0
        %1447 = vmatpush1.bf16.msra.mxu0 %v1404
        %1448 = vmatprep.subr.bf16.mxu0 0
        %1449 = vmatpush1.bf16.msra.mxu0 %v1405
        %1450 = vmatprep.subr.bf16.mxu0 0
        %1451 = vmatpush1.bf16.msra.mxu0 %v1406
        %1452 = vmatprep.subr.bf16.mxu0 0
        %1453 = vmatpush1.bf16.msra.mxu0 %v1407
        %1454 = vmatprep.subr.bf16.mxu0 0
        %1455 = vmatpush1.bf16.msra.mxu0 %v1408
        %1456 = vmatprep.subr.bf16.mxu0 0
        %1457 = vmatpush1.bf16.msra.mxu0 %v1409
        %1458 = vmatprep.mubr.bf16.mxu0 %v1283
        %1459 = vmatmul.mubr.bf16.gmra.mrb[0].mxu0 %v1282
        %v1460 = vpop.f32.mrb[0].mxu0
        %v1461 = vadd.f32 0.0, %v1460
        %v1462 = vpop.f32.mrb[0].mxu0
        %v1463 = vpop.f32.mrb[0].mxu0
        %v1464 = vadd.f32 0.0, %v1463
        %v1465 = vpop.f32.mrb[0].mxu0
        %1466 = vmatprep.mubr.bf16.mxu0 %v1285
        %1467 = vmatmul.mubr.bf16.gmra.mrb[0].mxu0 %v1284
        %v1468 = vpop.f32.mrb[0].mxu0
        %v1469 = vadd.f32 0.0, %v1468
        %v1470 = vpop.f32.mrb[0].mxu0
        %v1471 = vpop.f32.mrb[0].mxu0
        %v1472 = vadd.f32 0.0, %v1471
        %v1473 = vpop.f32.mrb[0].mxu0
        %1474 = vmatprep.mubr.bf16.mxu0 %v1287
        %1475 = vmatmul.mubr.bf16.gmra.mrb[0].mxu0 %v1286
        %v1476 = vpop.f32.mrb[0].mxu0
        %v1477 = vadd.f32 0.0, %v1476
        %v1478 = vpop.f32.mrb[0].mxu0
        %v1479 = vpop.f32.mrb[0].mxu0
        %v1480 = vadd.f32 0.0, %v1479
        %v1481 = vpop.f32.mrb[0].mxu0
        %1482 = vmatprep.mubr.bf16.mxu0 %v1289
        %1483 = vmatmul.mubr.bf16.gmra.mrb[0].mxu0 %v1288
        %v1484 = vpop.f32.mrb[0].mxu0
        %v1485 = vadd.f32 0.0, %v1484
        %v1486 = vpop.f32.mrb[0].mxu0
        %v1487 = vpop.f32.mrb[0].mxu0
        %v1488 = vadd.f32 0.0, %v1487
        %v1489 = vpop.f32.mrb[0].mxu0
        %1490 = vmatprep.mubr.bf16.mxu0 %v1291
        %1491 = vmatmul.mubr.bf16.gmra.mrb[0].mxu0 %v1290
        %v1492 = vpop.f32.mrb[0].mxu0
        %v1493 = vadd.f32 0.0, %v1492
        %v1494 = vpop.f32.mrb[0].mxu0
        %v1495 = vpop.f32.mrb[0].mxu0
        %v1496 = vadd.f32 0.0, %v1495
        %v1497 = vpop.f32.mrb[0].mxu0
        %1498 = vmatprep.mubr.bf16.mxu0 %v1293
        %1499 = vmatmul.mubr.bf16.gmra.mrb[0].mxu0 %v1292
        %v1500 = vpop.f32.mrb[0].mxu0
        %v1501 = vadd.f32 0.0, %v1500
        %v1502 = vpop.f32.mrb[0].mxu0
        %v1503 = vpop.f32.mrb[0].mxu0
        %v1504 = vadd.f32 0.0, %v1503
        %v1505 = vpop.f32.mrb[0].mxu0
        %1506 = vmatprep.mubr.bf16.mxu0 %v1295
        %1507 = vmatmul.mubr.bf16.gmra.mrb[0].mxu0 %v1294
        %v1508 = vpop.f32.mrb[0].mxu0
        %v1509 = vadd.f32 0.0, %v1508
        %v1510 = vpop.f32.mrb[0].mxu0
        %v1511 = vpop.f32.mrb[0].mxu0
        %v1512 = vadd.f32 0.0, %v1511
        %v1513 = vpop.f32.mrb[0].mxu0
        %1514 = vmatprep.mubr.bf16.mxu0 %v1297
        %1515 = vmatmul.mubr.bf16.gmra.mrb[0].mxu0 %v1296
        %v1516 = vpop.f32.mrb[0].mxu0
        %v1517 = vadd.f32 0.0, %v1516
        %v1518 = vpop.f32.mrb[0].mxu0
        %v1519 = vpop.f32.mrb[0].mxu0
        %v1520 = vadd.f32 0.0, %v1519
        %v1521 = vpop.f32.mrb[0].mxu0
        %1522 = vdwg.mxu0
        %vm1523 = vcmask 130048
        %1524 = vst.msk [vmem:[%s416] sm:$0xff] %vm1523, %v1461
        %1525 = vst.msk [vmem:[%s416 + $0x8] sm:$0xff] %vm1523, %v1464
        %1526 = vst.msk [vmem:[%s416 + $0x10] sm:$0xff] %vm1523, %v1469
        %1527 = vst.msk [vmem:[%s416 + $0x18] sm:$0xff] %vm1523, %v1472
        %1528 = vst.msk [vmem:[%s416 + $0x20] sm:$0xff] %vm1523, %v1477
        %1529 = vst.msk [vmem:[%s416 + $0x28] sm:$0xff] %vm1523, %v1480
        %1530 = vst.msk [vmem:[%s416 + $0x30] sm:$0xff] %vm1523, %v1485
        %1531 = vst.msk [vmem:[%s416 + $0x38] sm:$0xff] %vm1523, %v1488
        %1532 = vst.msk [vmem:[%s416 + $0x40] sm:$0xff] %vm1523, %v1493
        %1533 = vst.msk [vmem:[%s416 + $0x48] sm:$0xff] %vm1523, %v1496
        %1534 = vst.msk [vmem:[%s416 + $0x50] sm:$0xff] %vm1523, %v1501
        %1535 = vst.msk [vmem:[%s416 + $0x58] sm:$0xff] %vm1523, %v1504
        %1536 = vst.msk [vmem:[%s416 + $0x60] sm:$0xff] %vm1523, %v1509
        %1537 = vst.msk [vmem:[%s416 + $0x68] sm:$0xff] %vm1523, %v1512
        %1538 = vst.msk [vmem:[%s416 + $0x70] sm:$0xff] %vm1523, %v1517
        %1539 = vst.msk [vmem:[%s416 + $0x78] sm:$0xff] %vm1523, %v1520
        %s1540 = smul.u32 16, %s31
        %p1541 = scmp.lt.s32.totalorder %s32, 7
        %s1542 = scalar_select %p1541, %s32, 7
        %p1543 = scmp.lt.s32.totalorder %s1540, 31
        %s1544 = scalar_select %p1543, %s1540, 31
        %s1545 = smul.addr %s1542, 32
        %s1546 = sadd.s32 %s1544, %s1545
        %s1547 = smul.addr %s1546, 8
        %s1548 = scalar_lea.vmem %s5, %s1547
        %s1549 = sand.u32 %s209, 1
        %s1550 = scalar_lea.sflag [#allocation4], %s1549
        %s1551 = sand.u32 %s209, 1
        %s1552 = smul.addr %s1551, 256
        %s1553 = scalar_lea.vmem [#allocation7], %s1552
        // Predicated region
        $region49: #{tpu_custom_call.1} parent=39 // pred_check
          %p1554 = pneg %p191
        $region50: #{tpu_custom_call.1} parent=39 // pred_check_branch
          %1556 = sbr.rel (%p1554) target = $region52
        $region51: #{tpu_custom_call.1} parent=39 // pred_region
          %s1557 = smul.u32 16, %s31
        $region52: #{tpu_custom_call.1} parent=39 // pred_fallthru
          _
        // Predicated region
        $region53: #{tpu_custom_call.1} parent=39 // pred_check
          %p1558 = pneg %p219
        $region54: #{tpu_custom_call.1} parent=39 // pred_check_branch
          %1560 = sbr.rel (%p1558) target = $region56
        $region55: #{tpu_custom_call.1} parent=39 // pred_region
          %s1561 = smul.u32 16, %s31
          %s1563 = ssub.s32 4096, 4096
          %1564 = vsyncadd %s1550, %s1563
          %s1565 = smul.addr %s1561, 2
          %s1566 = smul.addr %s32, 64
          %s1567 = sadd.s32 %s1565, %s1566
          %s1568 = smul.addr %s1567, 128
          %s1569 = scalar_lea.hbm %s6, %s1568
          %s1570 = sshll.u32 %s1553, 4
          %s1571 = int_to_ptr.vmem [resolvable:$true] %s1570
          %1576 = dma.vmem_to_hbm [thread:$0]  %s1571, 4096, %s1569, %s1550, 256, 256, 16
        $region56: #{tpu_custom_call.1} parent=39 // pred_fallthru
          _
      $region40: #{tpu_custom_call.1} parent=5 // pred_fallthru
        _
      %p1577 = scmp.le.s32.totalorder 2, %s22
      // Predicated region
      $region57: #{tpu_custom_call.1} parent=5 // pred_check
        %p1578 = pneg %p1577
      $region58: #{tpu_custom_call.1} parent=5 // pred_check_branch
        %1580 = sbr.rel (%p1578) target = $region60
      $region59: #{tpu_custom_call.1} parent=5 // pred_region
        %s1581 = ssub.s32 %s22, 2
        // Predicated region
        $region61: #{tpu_custom_call.1} parent=59 // pred_check
          %p1582 = pneg %p197
        $region62: #{tpu_custom_call.1} parent=59 // pred_check_branch
          %1584 = sbr.rel (%p1582) target = $region64
        $region63: #{tpu_custom_call.1} parent=59 // pred_region
          %s1585 = smul.u32 16, %s33
          %p1586 = scmp.lt.s32.totalorder %s34, 7
          %s1587 = scalar_select %p1586, %s34, 7
          %p1588 = scmp.lt.s32.totalorder %s1585, 31
          %s1589 = scalar_select %p1588, %s1585, 31
          %s1590 = smul.addr %s1587, 32
          %s1591 = sadd.s32 %s1589, %s1590
          %s1592 = smul.addr %s1591, 8
          %s1593 = scalar_lea.vmem %s5, %s1592
        $region64: #{tpu_custom_call.1} parent=59 // pred_fallthru
          _
        // Predicated region
        $region65: #{tpu_custom_call.1} parent=59 // pred_check
          %p1594 = pneg %p225
        $region66: #{tpu_custom_call.1} parent=59 // pred_check_branch
          %1596 = sbr.rel (%p1594) target = $region68
        $region67: #{tpu_custom_call.1} parent=59 // pred_region
          %s1597 = sand.u32 %s210, 1
          %s1598 = scalar_lea.sflag [#allocation4], %s1597
          %s1599 = sand.u32 %s210, 1
          %s1600 = smul.addr %s1599, 256
          %s1601 = scalar_lea.vmem [#allocation7], %s1600
          %1602 = dma.done %s1598, 4096
        $region68: #{tpu_custom_call.1} parent=59 // pred_fallthru
          _
      $region60: #{tpu_custom_call.1} parent=5 // pred_fallthru
        _
    $region6: #{tpu_custom_call.1} parent=1 // loop_footer
      %s26 = sadd.s32 1, %s22
    $region7: #{tpu_custom_call.1} parent=1 // loop_footer_branch
      %21 = sbr.rel target = $region3
    $region8: #{tpu_custom_call.1} parent=1 // loop_exit
      _
    %1603 = vsyncpa [#allocation3], 1
    %s1604 = scalar_lea.sflag [#allocation3], 1
    %1605 = vsyncpa %s1604, 1
    %1606 = vsyncpa [#allocation6], 1
    %s1607 = scalar_lea.sflag [#allocation6], 1
    %1608 = vsyncpa %s1607, 1
    %1609 = vsyncpa [#allocation4], 1
    %s1610 = scalar_lea.sflag [#allocation4], 1
    %1611 = vsyncpa %s1610, 1

</llo_original>
